<compile_context>
chip_gen: v5e
topology: v5e:2x2
jax: 0.10.0
libtpu: 0.0.40
codegen_flags: <defaults>
</compile_context>

<pallas_src>
import math
from functools import partial

import jax
import jax.numpy as jnp
from jax.experimental import pallas as pl
from jax.experimental.pallas import tpu as pltpu


# ------------------------------------ kernel -------------------------------------------

def _sentiment_kernel(TB, H, A, V, FF, CP, woff, boff,
                      acts_ref, w_ref, b_ref, out_ref):
    f32 = jnp.float32

    def W(name, rows, cols):                       # static window into the weight slab
        o = woff[name]
        return w_ref[o:o + rows, 0:cols]

    def Bvec(name, cols):                          # one bias / LN row, [1, cols]
        r = boff[name]
        return b_ref[r:r + 1, 0:cols]

    def sigmoid(x):
        # divide moved to the EUP reciprocal path (approx), matching the softmax treatment
        return pl.reciprocal(1.0 + jnp.exp(-x), approx=True)

    def layer_norm(h, g, bb):
        mu = jnp.mean(h, axis=-1, keepdims=True)
        var = jnp.mean((h - mu) ** 2, axis=-1, keepdims=True)
        return (h - mu) * jax.lax.rsqrt(var + 1e-5) * g + bb

    acts = acts_ref[...]                           # [TB, LP]: row = [text | audio | video]
    text = acts[:, 0:H]
    a_in = acts[:, H:H + A]
    v_in = acts[:, H + A:H + A + V]

    # ---- 1-layer LSTM over a length-1 sequence, zero init state (per modality) --------
    def lstm_step(xin, K, wname, bname):
        # single fused [K, 3H] gate matmul, columns [i | g | o]; forget gate skipped (c0==0)
        g = jnp.dot(xin, W(wname, K, 3 * H), preferred_element_type=f32) + Bvec(bname, 3 * H)
        gi, gg, go = g[:, 0:H], g[:, H:2 * H], g[:, 2 * H:3 * H]
        return sigmoid(go) * jnp.tanh(sigmoid(gi) * jnp.tanh(gg))

    h_a = lstm_step(a_in, A, "w_lstm_a", "b_lstm_a")                    # [TB, H]
    h_v = lstm_step(v_in, V, "w_lstm_v", "b_lstm_v")                    # [TB, H]

    # ---- torch.stack([text, audio, video], dim=0): modality-major rows (contiguous) ----
    x = jnp.concatenate([text, h_a, h_v], axis=0)                       # [3TB, H]

    # block-diagonal (per head) ones * 1/sqrt(DH): rank-2 matmul computing per-head
    # QK^T scores broadcast across each head's DH lanes.
    seg = W("seg", H, H)

    # ---- 2x TransformerEncoderLayer (post-norm, ReLU FFN, dropout inactive) ------------
    for l in range(2):
        qkv = (jnp.dot(x, W(f"wqkv{l}", H, 3 * H), preferred_element_type=f32)
               + Bvec(f"bqkv{l}", 3 * H))                               # [3TB, 3H]
        q, k, v = qkv[:, 0:H], qkv[:, H:2 * H], qkv[:, 2 * H:3 * H]

        # all heads & all queries vs key/value slab t; softmax over the 3 keys elementwise
        e, vt3 = [], []
        for t in range(3):
            kt = k[t * TB:(t + 1) * TB]
            vt = v[t * TB:(t + 1) * TB]
            kt3 = jnp.concatenate([kt, kt, kt], axis=0)                 # key block -> all 3 query blocks
            vt3.append(jnp.concatenate([vt, vt, vt], axis=0))
            e.append(jnp.dot(q * kt3, seg, preferred_element_type=f32))  # [3TB, H] per-head scores
        m = jnp.maximum(jnp.maximum(e[0], e[1]), e[2])
        p = [jnp.exp(et - m) for et in e]
        inv = pl.reciprocal(p[0] + p[1] + p[2], approx=True)
        ctx = (p[0] * vt3[0] + p[1] * vt3[1] + p[2] * vt3[2]) * inv      # [3TB, H], heads concat'ed

        attn = jnp.dot(ctx, W(f"wo{l}", H, H), preferred_element_type=f32) + Bvec(f"bo{l}", H)
        x = layer_norm(x + attn, Bvec(f"ln1g{l}", H), Bvec(f"ln1b{l}", H))

        ff = jnp.maximum(jnp.dot(x, W(f"w1{l}", H, FF), preferred_element_type=f32)
                         + Bvec(f"b1{l}", FF), 0.0)
        ff = jnp.dot(ff, W(f"w2{l}", FF, H), preferred_element_type=f32) + Bvec(f"b2{l}", H)
        x = layer_norm(x + ff, Bvec(f"ln2g{l}", H), Bvec(f"ln2b{l}", H))

    # ---- mean over modality axis; dropout == identity in eval; fc; softmax -------------
    pooled = (x[0:TB] + x[TB:2 * TB] + x[2 * TB:3 * TB]) * (1.0 / 3.0)  # [TB, H]
    logits = jnp.dot(pooled, W("fc", H, CP), preferred_element_type=f32) + Bvec("fc_b", CP)
    logits = logits - jnp.max(logits, axis=-1, keepdims=True)
    ex = jnp.exp(logits)
    # padded classes carry a -1e30 bias -> exp == 0; exact divide keeps rows summing to 1
    out_ref[...] = ex / jnp.sum(ex, axis=-1, keepdims=True)


# ------------------------------ wrapper-side parameter prep -----------------------------

def build_raw_params(key, A, V, H, FF, C):
    """PyTorch-layout parameters (random stand-ins for the trained weights)."""
    ks = iter(jax.random.split(key, 40))

    def rnd(shape, scale=0.1):
        return jax.random.normal(next(ks), shape, dtype=jnp.float32) * scale

    return dict(
        # LSTM encoders: weight_ih_l0 [4H, in], bias_ih_l0 [4H], bias_hh_l0 [4H]
        a_w_ih=rnd((4 * H, A)), a_b_ih=rnd((4 * H,)), a_b_hh=rnd((4 * H,)),
        v_w_ih=rnd((4 * H, V)), v_b_ih=rnd((4 * H,)), v_b_hh=rnd((4 * H,)),
        # 2 TransformerEncoderLayers (leading axis = layer)
        in_proj_w=rnd((2, 3 * H, H)), in_proj_b=rnd((2, 3 * H)),
        out_proj_w=rnd((2, H, H)), out_proj_b=rnd((2, H)),
        ln1_g=jnp.ones((2, H), jnp.float32), ln1_b=jnp.zeros((2, H), jnp.float32),
        lin1_w=rnd((2, FF, H)), lin1_b=rnd((2, FF)),
        lin2_w=rnd((2, H, FF)), lin2_b=rnd((2, H)),
        ln2_g=jnp.ones((2, H), jnp.float32), ln2_b=jnp.zeros((2, H), jnp.float32),
        # final classifier
        fc_w=rnd((C, H)), fc_b=rnd((C,)),
    )


def _pad_rows_to(x, mult):
    pad = (-x.shape[0]) % mult
    if pad:
        x = jnp.concatenate([x, jnp.zeros((pad,) + x.shape[1:], x.dtype)], axis=0)
    return x


class _WeightSlab:
    """Packs many small [r, c] matrices into one [rows, lanes] buffer => ONE DMA."""

    def __init__(self, lanes):
        self.lanes = lanes
        self.parts = []
        self.off = {}
        self.row = 0

    def add(self, name, mat):
        mat = jnp.asarray(mat, jnp.float32)
        r, c = mat.shape
        blk = jnp.zeros((r, self.lanes), jnp.float32).at[:, :c].set(mat)
        blk = _pad_rows_to(blk, 8)                     # keep every offset sublane-aligned
        self.off[name] = self.row
        self.parts.append(blk)
        self.row += blk.shape[0]

    def build(self):
        return jnp.concatenate(self.parts, axis=0), self.off


class _BiasSlab:
    """One padded 128-lane row per bias / LN vector => ONE DMA."""

    def __init__(self, lanes):
        self.lanes = lanes
        self.rows = []
        self.off = {}

    def add(self, name, vec, fill=0.0):
        vec = jnp.asarray(vec, jnp.float32).reshape(-1)
        row = jnp.full((1, self.lanes), fill, jnp.float32).at[0, :vec.shape[0]].set(vec)
        self.off[name] = len(self.rows)
        self.rows.append(row)

    def build(self):
        return _pad_rows_to(jnp.concatenate(self.rows, axis=0), 8), self.off


def pack_params(raw, *, A, V, H, NH, FF, C, CP, lanes):
    """Free wrapper-side re-layout: transpose to [in, out], fuse LSTM gates / QKV, build
    the per-head segment-sum matrix, pad the classifier to CP lanes, and pack everything
    into one weight slab + one bias slab."""
    DH = H // NH
    scale = 1.0 / math.sqrt(DH)

    def lstm_fused(w_ih, b_ih, b_hh):
        # PyTorch gate order i, f, g, o; forget gate dropped (c0 == 0); b_hh folded in.
        b = b_ih + b_hh
        w = jnp.concatenate([w_ih[0:H].T, w_ih[2 * H:3 * H].T, w_ih[3 * H:4 * H].T], axis=1)
        bb = jnp.concatenate([b[0:H], b[2 * H:3 * H], b[3 * H:4 * H]])
        return w, bb                                   # [in, 3H], [3H]

    wa, ba = lstm_fused(raw['a_w_ih'], raw['a_b_ih'], raw['a_b_hh'])
    wv, bv = lstm_fused(raw['v_w_ih'], raw['v_b_ih'], raw['v_b_hh'])

    ws = _WeightSlab(lanes)
    bs = _BiasSlab(lanes)

    ws.add("seg", jnp.kron(jnp.eye(NH, dtype=jnp.float32),
                           jnp.ones((DH, DH), jnp.float32)) * scale)    # [H, H]
    ws.add("w_lstm_a", wa)
    ws.add("w_lstm_v", wv)
    bs.add("b_lstm_a", ba)
    bs.add("b_lstm_v", bv)

    for l in range(2):
        ws.add(f"wqkv{l}", raw['in_proj_w'][l].T)      # [H, 3H], columns [q | k | v]
        ws.add(f"wo{l}", raw['out_proj_w'][l].T)       # [H, H]
        ws.add(f"w1{l}", raw['lin1_w'][l].T)           # [H, FF]
        ws.add(f"w2{l}", raw['lin2_w'][l].T)           # [FF, H]
        bs.add(f"bqkv{l}", raw['in_proj_b'][l])
        bs.add(f"bo{l}", raw['out_proj_b'][l])
        bs.add(f"ln1g{l}", raw['ln1_g'][l])
        bs.add(f"ln1b{l}", raw['ln1_b'][l])
        bs.add(f"b1{l}", raw['lin1_b'][l])
        bs.add(f"b2{l}", raw['lin2_b'][l])
        bs.add(f"ln2g{l}", raw['ln2_g'][l])
        bs.add(f"ln2b{l}", raw['ln2_b'][l])

    # lane-dense classifier: pad classes to CP lanes; padded logits get a -1e30 bias
    ws.add("fc", jnp.zeros((H, CP), jnp.float32).at[:, :C].set(raw['fc_w'].T))
    bs.add("fc_b", raw['fc_b'], fill=-1e30)

    wslab, woff = ws.build()
    bslab, boff = bs.build()
    return wslab, woff, bslab, boff


def transformer_sentiment_predictor(text_hidden, audio, video, raw_params, *,
                                    num_heads, ff_dim, num_classes):
    B, _, H = text_hidden.shape
    A = audio.shape[-1]
    V = video.shape[-1]
    FF = ff_dim
    CP = 128 * pl.cdiv(num_classes, 128)               # lane-dense output width
    lanes = 128 * pl.cdiv(max(3 * H, FF, CP), 128)      # common lane width for the slabs

    # TODO(synk): the pretrained BERT text encoder is not reproduced; the wrapper consumes
    # a precomputed last_hidden_state and mean-pools it here (plain XLA reduction), so the
    # potentially huge [B, S, H] tensor never enters kernel VMEM.
    text_feat = jnp.mean(text_hidden, axis=1)                           # [B, H]

    # single activation slab: row b = [text | audio | video] -> one DMA
    feat = jnp.concatenate([text_feat, audio, video], axis=1)           # [B, H+A+V]
    LP = 128 * pl.cdiv(H + A + V, 128)
    acts = jnp.zeros((B, LP), jnp.float32).at[:, :H + A + V].set(feat)

    # batch tiling: one block for small B, 128-row blocks otherwise (3*TB >= 384 matmul rows)
    if B <= 128:
        TB, BP = B, B
    else:
        TB = 128
        BP = TB * pl.cdiv(B, TB)
        acts = jnp.zeros((BP, LP), jnp.float32).at[:B].set(acts)

    wslab, woff, bslab, boff = pack_params(raw_params, A=A, V=V, H=H, NH=num_heads,
                                           FF=FF, C=num_classes, CP=CP, lanes=lanes)
    # TODO(synk): at real BERT scale (H=768, FF=2048) ship the weight slab in bf16 and set
    # vmem_limit_bytes explicitly; kept f32 here since the toy slab is ~200 KB.

    kernel = partial(_sentiment_kernel, TB, H, A, V, FF, CP, woff, boff)
    out_padded = pl.pallas_call(
        kernel,
        out_shape=jax.ShapeDtypeStruct((BP, CP), jnp.float32),
        grid=(BP // TB,),
        in_specs=[
            pl.BlockSpec((TB, LP), lambda i: (i, 0)),            # activations: tiled over batch
            pl.BlockSpec(wslab.shape, lambda i: (0, 0)),         # weight slab: resident
            pl.BlockSpec(bslab.shape, lambda i: (0, 0)),         # bias slab: resident
        ],
        out_specs=pl.BlockSpec((TB, CP), lambda i: (i, 0)),
        compiler_params=pltpu.CompilerParams(dimension_semantics=("parallel",)),
    )(acts, wslab, bslab)
    return out_padded[:B, :num_classes]


if __name__ == "__main__":
    B, St = 2, 8          # batch, text tokens
    A, V = 16, 24         # audio_hidden_size, video_hidden_size
    H, NH = 32, 4         # transformer_hidden_size (BERT hidden stand-in), num_heads
    FF = 64               # dim_feedforward (small stand-in for PyTorch default 2048)
    C = 3                 # num_classes

    key = jax.random.PRNGKey(0)
    k_text, k_audio, k_video, k_params = jax.random.split(key, 4)
    text_hidden = jax.random.normal(k_text, (B, St, H), dtype=jnp.float32)  # BERT output stand-in
    audio = jax.random.normal(k_audio, (B, A), dtype=jnp.float32)
    video = jax.random.normal(k_video, (B, V), dtype=jnp.float32)
    raw = build_raw_params(k_params, A, V, H, FF, C)

    out = transformer_sentiment_predictor(text_hidden, audio, video, raw,
                                          num_heads=NH, ff_dim=FF, num_classes=C)
    out = jax.block_until_ready(out)
    assert out.shape == (B, C)
    assert bool(jnp.all(jnp.isfinite(out)))
    # softmax rows should sum to ~1 (final softmax uses an exact divide)
    assert bool(jnp.all(jnp.abs(jnp.sum(out, axis=-1) - 1.0) < 1e-4))
    print("KERNEL_OK")
</pallas_src>

<mosaic_0001>
module attributes {stable_mosaic.version = 11 : i64} {
  func.func @_sentiment_kernel(%arg0: i32, %arg1: memref<2x128xf32, #tpu.memory_space<vmem>>, %arg2: memref<424x128xf32, #tpu.memory_space<vmem>>, %arg3: memref<24x128xf32, #tpu.memory_space<vmem>>, %arg4: memref<2x128xf32, #tpu.memory_space<vmem>>) attributes {dimension_semantics = [#tpu.dimension_semantics<parallel>], iteration_bounds = array<i64: 1>, scalar_prefetch = 0 : i64, scratch_operands = 0 : i64, tpu.core_type = #tpu.core_type<tc>, window_params = [{transform_indices = @transform_0, window_bounds = array<i64: 2, 128>}, {pipeline_mode = #tpu.pipeline_mode<synchronous>, transform_indices = @transform_1, window_bounds = array<i64: 424, 128>}, {pipeline_mode = #tpu.pipeline_mode<synchronous>, transform_indices = @transform_2, window_bounds = array<i64: 24, 128>}, {transform_indices = @transform_3, window_bounds = array<i64: 2, 128>}]} {
    %c0 = arith.constant 0 : index
    %c0_0 = arith.constant 0 : index
    %0 = vector.load %arg1[%c0, %c0_0] : memref<2x128xf32, #tpu.memory_space<vmem>>, vector<2x128xf32>
    %1 = vector.extract_strided_slice %0 {offsets = [0, 0], sizes = [2, 32], strides = [1, 1]} : vector<2x128xf32> to vector<2x32xf32>
    %2 = vector.extract_strided_slice %0 {offsets = [0, 32], sizes = [2, 16], strides = [1, 1]} : vector<2x128xf32> to vector<2x16xf32>
    %3 = vector.extract_strided_slice %0 {offsets = [0, 48], sizes = [2, 24], strides = [1, 1]} : vector<2x128xf32> to vector<2x24xf32>
    %c32 = arith.constant 32 : index
    %c0_1 = arith.constant 0 : index
    %4 = vector.load %arg2[%c32, %c0_1] : memref<424x128xf32, #tpu.memory_space<vmem>>, vector<16x96xf32>
    %cst = arith.constant dense<0.000000e+00> : vector<2x96xf32>
    %5 = tpu.matmul %2, %4, %cst {dimension_numbers = #tpu.dot_dimension_numbers<[1], [0], [0], [1], [0, 0, 1, 1], [], []>} : vector<2x16xf32>, vector<16x96xf32>, vector<2x96xf32> -> vector<2x96xf32>
    %c0_2 = arith.constant 0 : index
    %c0_3 = arith.constant 0 : index
    %6 = vector.load %arg3[%c0_2, %c0_3] : memref<24x128xf32, #tpu.memory_space<vmem>>, vector<1x96xf32>
    %7 = vector.broadcast %6 : vector<1x96xf32> to vector<2x96xf32>
    %8 = arith.addf %5, %7 : vector<2x96xf32>
    %9 = vector.extract_strided_slice %8 {offsets = [0, 0], sizes = [2, 32], strides = [1, 1]} : vector<2x96xf32> to vector<2x32xf32>
    %10 = vector.extract_strided_slice %8 {offsets = [0, 32], sizes = [2, 32], strides = [1, 1]} : vector<2x96xf32> to vector<2x32xf32>
    %11 = vector.extract_strided_slice %8 {offsets = [0, 64], sizes = [2, 32], strides = [1, 1]} : vector<2x96xf32> to vector<2x32xf32>
    %cst_4 = arith.constant 0.000000e+00 : f32
    %12 = vector.broadcast %cst_4 : f32 to vector<2x32xf32>
    %13 = arith.subf %12, %11 : vector<2x32xf32>
    %14 = math.exp %13 : vector<2x32xf32>
    %cst_5 = arith.constant 1.000000e+00 : f32
    %15 = vector.broadcast %cst_5 : f32 to vector<2x32xf32>
    %16 = arith.addf %15, %14 : vector<2x32xf32>
    %17 = tpu.reciprocal %16 {approx = true} : vector<2x32xf32> -> vector<2x32xf32>
    %cst_6 = arith.constant 0.000000e+00 : f32
    %18 = vector.broadcast %cst_6 : f32 to vector<2x32xf32>
    %19 = arith.subf %18, %9 : vector<2x32xf32>
    %20 = math.exp %19 : vector<2x32xf32>
    %cst_7 = arith.constant 1.000000e+00 : f32
    %21 = vector.broadcast %cst_7 : f32 to vector<2x32xf32>
    %22 = arith.addf %21, %20 : vector<2x32xf32>
    %23 = tpu.reciprocal %22 {approx = true} : vector<2x32xf32> -> vector<2x32xf32>
    %24 = math.tanh %10 : vector<2x32xf32>
    %25 = arith.mulf %23, %24 : vector<2x32xf32>
    %26 = math.tanh %25 : vector<2x32xf32>
    %27 = arith.mulf %17, %26 : vector<2x32xf32>
    %c48 = arith.constant 48 : index
    %c0_8 = arith.constant 0 : index
    %28 = vector.load %arg2[%c48, %c0_8] : memref<424x128xf32, #tpu.memory_space<vmem>>, vector<24x96xf32>
    %cst_9 = arith.constant dense<0.000000e+00> : vector<2x96xf32>
    %29 = tpu.matmul %3, %28, %cst_9 {dimension_numbers = #tpu.dot_dimension_numbers<[1], [0], [0], [1], [0, 0, 1, 1], [], []>} : vector<2x24xf32>, vector<24x96xf32>, vector<2x96xf32> -> vector<2x96xf32>
    %c1 = arith.constant 1 : index
    %c0_10 = arith.constant 0 : index
    %30 = vector.load %arg3[%c1, %c0_10] : memref<24x128xf32, #tpu.memory_space<vmem>>, vector<1x96xf32>
    %31 = vector.broadcast %30 : vector<1x96xf32> to vector<2x96xf32>
    %32 = arith.addf %29, %31 : vector<2x96xf32>
    %33 = vector.extract_strided_slice %32 {offsets = [0, 0], sizes = [2, 32], strides = [1, 1]} : vector<2x96xf32> to vector<2x32xf32>
    %34 = vector.extract_strided_slice %32 {offsets = [0, 32], sizes = [2, 32], strides = [1, 1]} : vector<2x96xf32> to vector<2x32xf32>
    %35 = vector.extract_strided_slice %32 {offsets = [0, 64], sizes = [2, 32], strides = [1, 1]} : vector<2x96xf32> to vector<2x32xf32>
    %cst_11 = arith.constant 0.000000e+00 : f32
    %36 = vector.broadcast %cst_11 : f32 to vector<2x32xf32>
    %37 = arith.subf %36, %35 : vector<2x32xf32>
    %38 = math.exp %37 : vector<2x32xf32>
    %cst_12 = arith.constant 1.000000e+00 : f32
    %39 = vector.broadcast %cst_12 : f32 to vector<2x32xf32>
    %40 = arith.addf %39, %38 : vector<2x32xf32>
    %41 = tpu.reciprocal %40 {approx = true} : vector<2x32xf32> -> vector<2x32xf32>
    %cst_13 = arith.constant 0.000000e+00 : f32
    %42 = vector.broadcast %cst_13 : f32 to vector<2x32xf32>
    %43 = arith.subf %42, %33 : vector<2x32xf32>
    %44 = math.exp %43 : vector<2x32xf32>
    %cst_14 = arith.constant 1.000000e+00 : f32
    %45 = vector.broadcast %cst_14 : f32 to vector<2x32xf32>
    %46 = arith.addf %45, %44 : vector<2x32xf32>
    %47 = tpu.reciprocal %46 {approx = true} : vector<2x32xf32> -> vector<2x32xf32>
    %48 = math.tanh %34 : vector<2x32xf32>
    %49 = arith.mulf %47, %48 : vector<2x32xf32>
    %50 = math.tanh %49 : vector<2x32xf32>
    %51 = arith.mulf %41, %50 : vector<2x32xf32>
    %52 = tpu.concatenate %1, %27, %51 in 0 : vector<2x32xf32>, vector<2x32xf32>, vector<2x32xf32> -> vector<6x32xf32>
    %c0_15 = arith.constant 0 : index
    %c0_16 = arith.constant 0 : index
    %53 = vector.load %arg2[%c0_15, %c0_16] : memref<424x128xf32, #tpu.memory_space<vmem>>, vector<32x32xf32>
    %c72 = arith.constant 72 : index
    %c0_17 = arith.constant 0 : index
    %54 = vector.load %arg2[%c72, %c0_17] : memref<424x128xf32, #tpu.memory_space<vmem>>, vector<32x96xf32>
    %cst_18 = arith.constant dense<0.000000e+00> : vector<6x96xf32>
    %55 = tpu.matmul %52, %54, %cst_18 {dimension_numbers = #tpu.dot_dimension_numbers<[1], [0], [0], [1], [0, 0, 1, 1], [], []>} : vector<6x32xf32>, vector<32x96xf32>, vector<6x96xf32> -> vector<6x96xf32>
    %c2 = arith.constant 2 : index
    %c0_19 = arith.constant 0 : index
    %56 = vector.load %arg3[%c2, %c0_19] : memref<24x128xf32, #tpu.memory_space<vmem>>, vector<1x96xf32>
    %57 = vector.broadcast %56 : vector<1x96xf32> to vector<6x96xf32>
    %58 = arith.addf %55, %57 : vector<6x96xf32>
    %59 = vector.extract_strided_slice %58 {offsets = [0, 0], sizes = [6, 32], strides = [1, 1]} : vector<6x96xf32> to vector<6x32xf32>
    %60 = vector.extract_strided_slice %58 {offsets = [0, 32], sizes = [6, 32], strides = [1, 1]} : vector<6x96xf32> to vector<6x32xf32>
    %61 = vector.extract_strided_slice %58 {offsets = [0, 64], sizes = [6, 32], strides = [1, 1]} : vector<6x96xf32> to vector<6x32xf32>
    %62 = vector.extract_strided_slice %60 {offsets = [0, 0], sizes = [2, 32], strides = [1, 1]} : vector<6x32xf32> to vector<2x32xf32>
    %63 = vector.extract_strided_slice %61 {offsets = [0, 0], sizes = [2, 32], strides = [1, 1]} : vector<6x32xf32> to vector<2x32xf32>
    %64 = tpu.concatenate %62, %62, %62 in 0 : vector<2x32xf32>, vector<2x32xf32>, vector<2x32xf32> -> vector<6x32xf32>
    %65 = tpu.concatenate %63, %63, %63 in 0 : vector<2x32xf32>, vector<2x32xf32>, vector<2x32xf32> -> vector<6x32xf32>
    %66 = arith.mulf %59, %64 : vector<6x32xf32>
    %cst_20 = arith.constant dense<0.000000e+00> : vector<6x32xf32>
    %67 = tpu.matmul %66, %53, %cst_20 {dimension_numbers = #tpu.dot_dimension_numbers<[1], [0], [0], [1], [0, 0, 1, 1], [], []>} : vector<6x32xf32>, vector<32x32xf32>, vector<6x32xf32> -> vector<6x32xf32>
    %68 = vector.extract_strided_slice %60 {offsets = [2, 0], sizes = [2, 32], strides = [1, 1]} : vector<6x32xf32> to vector<2x32xf32>
    %69 = vector.extract_strided_slice %61 {offsets = [2, 0], sizes = [2, 32], strides = [1, 1]} : vector<6x32xf32> to vector<2x32xf32>
    %70 = tpu.concatenate %68, %68, %68 in 0 : vector<2x32xf32>, vector<2x32xf32>, vector<2x32xf32> -> vector<6x32xf32>
    %71 = tpu.concatenate %69, %69, %69 in 0 : vector<2x32xf32>, vector<2x32xf32>, vector<2x32xf32> -> vector<6x32xf32>
    %72 = arith.mulf %59, %70 : vector<6x32xf32>
    %cst_21 = arith.constant dense<0.000000e+00> : vector<6x32xf32>
    %73 = tpu.matmul %72, %53, %cst_21 {dimension_numbers = #tpu.dot_dimension_numbers<[1], [0], [0], [1], [0, 0, 1, 1], [], []>} : vector<6x32xf32>, vector<32x32xf32>, vector<6x32xf32> -> vector<6x32xf32>
    %74 = vector.extract_strided_slice %60 {offsets = [4, 0], sizes = [2, 32], strides = [1, 1]} : vector<6x32xf32> to vector<2x32xf32>
    %75 = vector.extract_strided_slice %61 {offsets = [4, 0], sizes = [2, 32], strides = [1, 1]} : vector<6x32xf32> to vector<2x32xf32>
    %76 = tpu.concatenate %74, %74, %74 in 0 : vector<2x32xf32>, vector<2x32xf32>, vector<2x32xf32> -> vector<6x32xf32>
    %77 = tpu.concatenate %75, %75, %75 in 0 : vector<2x32xf32>, vector<2x32xf32>, vector<2x32xf32> -> vector<6x32xf32>
    %78 = arith.mulf %59, %76 : vector<6x32xf32>
    %cst_22 = arith.constant dense<0.000000e+00> : vector<6x32xf32>
    %79 = tpu.matmul %78, %53, %cst_22 {dimension_numbers = #tpu.dot_dimension_numbers<[1], [0], [0], [1], [0, 0, 1, 1], [], []>} : vector<6x32xf32>, vector<32x32xf32>, vector<6x32xf32> -> vector<6x32xf32>
    %80 = arith.maximumf %67, %73 : vector<6x32xf32>
    %81 = arith.maximumf %80, %79 : vector<6x32xf32>
    %82 = arith.subf %67, %81 : vector<6x32xf32>
    %83 = math.exp %82 : vector<6x32xf32>
    %84 = arith.subf %73, %81 : vector<6x32xf32>
    %85 = math.exp %84 : vector<6x32xf32>
    %86 = arith.subf %79, %81 : vector<6x32xf32>
    %87 = math.exp %86 : vector<6x32xf32>
    %88 = arith.addf %83, %85 : vector<6x32xf32>
    %89 = arith.addf %88, %87 : vector<6x32xf32>
    %90 = tpu.reciprocal %89 {approx = true} : vector<6x32xf32> -> vector<6x32xf32>
    %91 = arith.mulf %83, %65 : vector<6x32xf32>
    %92 = arith.mulf %85, %71 : vector<6x32xf32>
    %93 = arith.addf %91, %92 : vector<6x32xf32>
    %94 = arith.mulf %87, %77 : vector<6x32xf32>
    %95 = arith.addf %93, %94 : vector<6x32xf32>
    %96 = arith.mulf %95, %90 : vector<6x32xf32>
    %c104 = arith.constant 104 : index
    %c0_23 = arith.constant 0 : index
    %97 = vector.load %arg2[%c104, %c0_23] : memref<424x128xf32, #tpu.memory_space<vmem>>, vector<32x32xf32>
    %cst_24 = arith.constant dense<0.000000e+00> : vector<6x32xf32>
    %98 = tpu.matmul %96, %97, %cst_24 {dimension_numbers = #tpu.dot_dimension_numbers<[1], [0], [0], [1], [0, 0, 1, 1], [], []>} : vector<6x32xf32>, vector<32x32xf32>, vector<6x32xf32> -> vector<6x32xf32>
    %c3 = arith.constant 3 : index
    %c0_25 = arith.constant 0 : index
    %99 = vector.load %arg3[%c3, %c0_25] : memref<24x128xf32, #tpu.memory_space<vmem>>, vector<1x32xf32>
    %100 = vector.broadcast %99 : vector<1x32xf32> to vector<6x32xf32>
    %101 = arith.addf %98, %100 : vector<6x32xf32>
    %102 = arith.addf %52, %101 : vector<6x32xf32>
    %c4 = arith.constant 4 : index
    %c0_26 = arith.constant 0 : index
    %103 = vector.load %arg3[%c4, %c0_26] : memref<24x128xf32, #tpu.memory_space<vmem>>, vector<1x32xf32>
    %c5 = arith.constant 5 : index
    %c0_27 = arith.constant 0 : index
    %104 = vector.load %arg3[%c5, %c0_27] : memref<24x128xf32, #tpu.memory_space<vmem>>, vector<1x32xf32>
    %cst_28 = arith.constant dense<0.000000e+00> : vector<6xf32>
    %105 = vector.multi_reduction <add>, %102, %cst_28 [1] : vector<6x32xf32> to vector<6xf32>
    %106 = vector.shape_cast %105 : vector<6xf32> to vector<6x1xf32>
    %cst_29 = arith.constant 3.200000e+01 : f32
    %107 = vector.broadcast %cst_29 : f32 to vector<6x1xf32>
    %108 = arith.divf %106, %107 : vector<6x1xf32>
    %109 = vector.broadcast %108 : vector<6x1xf32> to vector<6x32xf32>
    %110 = arith.subf %102, %109 : vector<6x32xf32>
    %111 = arith.mulf %110, %110 : vector<6x32xf32>
    %cst_30 = arith.constant dense<0.000000e+00> : vector<6xf32>
    %112 = vector.multi_reduction <add>, %111, %cst_30 [1] : vector<6x32xf32> to vector<6xf32>
    %113 = vector.shape_cast %112 : vector<6xf32> to vector<6x1xf32>
    %cst_31 = arith.constant 3.200000e+01 : f32
    %114 = vector.broadcast %cst_31 : f32 to vector<6x1xf32>
    %115 = arith.divf %113, %114 : vector<6x1xf32>
    %116 = vector.broadcast %108 : vector<6x1xf32> to vector<6x32xf32>
    %117 = arith.subf %102, %116 : vector<6x32xf32>
    %cst_32 = arith.constant 9.99999974E-6 : f32
    %118 = vector.broadcast %cst_32 : f32 to vector<6x1xf32>
    %119 = arith.addf %115, %118 : vector<6x1xf32>
    %120 = math.rsqrt %119 : vector<6x1xf32>
    %121 = vector.broadcast %120 : vector<6x1xf32> to vector<6x32xf32>
    %122 = arith.mulf %117, %121 : vector<6x32xf32>
    %123 = vector.broadcast %103 : vector<1x32xf32> to vector<6x32xf32>
    %124 = arith.mulf %122, %123 : vector<6x32xf32>
    %125 = vector.broadcast %104 : vector<1x32xf32> to vector<6x32xf32>
    %126 = arith.addf %124, %125 : vector<6x32xf32>
    %c136 = arith.constant 136 : index
    %c0_33 = arith.constant 0 : index
    %127 = vector.load %arg2[%c136, %c0_33] : memref<424x128xf32, #tpu.memory_space<vmem>>, vector<32x64xf32>
    %cst_34 = arith.constant dense<0.000000e+00> : vector<6x64xf32>
    %128 = tpu.matmul %126, %127, %cst_34 {dimension_numbers = #tpu.dot_dimension_numbers<[1], [0], [0], [1], [0, 0, 1, 1], [], []>} : vector<6x32xf32>, vector<32x64xf32>, vector<6x64xf32> -> vector<6x64xf32>
    %c6 = arith.constant 6 : index
    %c0_35 = arith.constant 0 : index
    %129 = vector.load %arg3[%c6, %c0_35] : memref<24x128xf32, #tpu.memory_space<vmem>>, vector<1x64xf32>
    %130 = vector.broadcast %129 : vector<1x64xf32> to vector<6x64xf32>
    %131 = arith.addf %128, %130 : vector<6x64xf32>
    %cst_36 = arith.constant 0.000000e+00 : f32
    %132 = vector.broadcast %cst_36 : f32 to vector<6x64xf32>
    %133 = arith.maximumf %131, %132 : vector<6x64xf32>
    %c168 = arith.constant 168 : index
    %c0_37 = arith.constant 0 : index
    %134 = vector.load %arg2[%c168, %c0_37] : memref<424x128xf32, #tpu.memory_space<vmem>>, vector<64x32xf32>
    %cst_38 = arith.constant dense<0.000000e+00> : vector<6x32xf32>
    %135 = tpu.matmul %133, %134, %cst_38 {dimension_numbers = #tpu.dot_dimension_numbers<[1], [0], [0], [1], [0, 0, 1, 1], [], []>} : vector<6x64xf32>, vector<64x32xf32>, vector<6x32xf32> -> vector<6x32xf32>
    %c7 = arith.constant 7 : index
    %c0_39 = arith.constant 0 : index
    %136 = vector.load %arg3[%c7, %c0_39] : memref<24x128xf32, #tpu.memory_space<vmem>>, vector<1x32xf32>
    %137 = vector.broadcast %136 : vector<1x32xf32> to vector<6x32xf32>
    %138 = arith.addf %135, %137 : vector<6x32xf32>
    %139 = arith.addf %126, %138 : vector<6x32xf32>
    %c8 = arith.constant 8 : index
    %c0_40 = arith.constant 0 : index
    %140 = vector.load %arg3[%c8, %c0_40] : memref<24x128xf32, #tpu.memory_space<vmem>>, vector<1x32xf32>
    %c9 = arith.constant 9 : index
    %c0_41 = arith.constant 0 : index
    %141 = vector.load %arg3[%c9, %c0_41] : memref<24x128xf32, #tpu.memory_space<vmem>>, vector<1x32xf32>
    %cst_42 = arith.constant dense<0.000000e+00> : vector<6xf32>
    %142 = vector.multi_reduction <add>, %139, %cst_42 [1] : vector<6x32xf32> to vector<6xf32>
    %143 = vector.shape_cast %142 : vector<6xf32> to vector<6x1xf32>
    %cst_43 = arith.constant 3.200000e+01 : f32
    %144 = vector.broadcast %cst_43 : f32 to vector<6x1xf32>
    %145 = arith.divf %143, %144 : vector<6x1xf32>
    %146 = vector.broadcast %145 : vector<6x1xf32> to vector<6x32xf32>
    %147 = arith.subf %139, %146 : vector<6x32xf32>
    %148 = arith.mulf %147, %147 : vector<6x32xf32>
    %cst_44 = arith.constant dense<0.000000e+00> : vector<6xf32>
    %149 = vector.multi_reduction <add>, %148, %cst_44 [1] : vector<6x32xf32> to vector<6xf32>
    %150 = vector.shape_cast %149 : vector<6xf32> to vector<6x1xf32>
    %cst_45 = arith.constant 3.200000e+01 : f32
    %151 = vector.broadcast %cst_45 : f32 to vector<6x1xf32>
    %152 = arith.divf %150, %151 : vector<6x1xf32>
    %153 = vector.broadcast %145 : vector<6x1xf32> to vector<6x32xf32>
    %154 = arith.subf %139, %153 : vector<6x32xf32>
    %cst_46 = arith.constant 9.99999974E-6 : f32
    %155 = vector.broadcast %cst_46 : f32 to vector<6x1xf32>
    %156 = arith.addf %152, %155 : vector<6x1xf32>
    %157 = math.rsqrt %156 : vector<6x1xf32>
    %158 = vector.broadcast %157 : vector<6x1xf32> to vector<6x32xf32>
    %159 = arith.mulf %154, %158 : vector<6x32xf32>
    %160 = vector.broadcast %140 : vector<1x32xf32> to vector<6x32xf32>
    %161 = arith.mulf %159, %160 : vector<6x32xf32>
    %162 = vector.broadcast %141 : vector<1x32xf32> to vector<6x32xf32>
    %163 = arith.addf %161, %162 : vector<6x32xf32>
    %c232 = arith.constant 232 : index
    %c0_47 = arith.constant 0 : index
    %164 = vector.load %arg2[%c232, %c0_47] : memref<424x128xf32, #tpu.memory_space<vmem>>, vector<32x96xf32>
    %cst_48 = arith.constant dense<0.000000e+00> : vector<6x96xf32>
    %165 = tpu.matmul %163, %164, %cst_48 {dimension_numbers = #tpu.dot_dimension_numbers<[1], [0], [0], [1], [0, 0, 1, 1], [], []>} : vector<6x32xf32>, vector<32x96xf32>, vector<6x96xf32> -> vector<6x96xf32>
    %c10 = arith.constant 10 : index
    %c0_49 = arith.constant 0 : index
    %166 = vector.load %arg3[%c10, %c0_49] : memref<24x128xf32, #tpu.memory_space<vmem>>, vector<1x96xf32>
    %167 = vector.broadcast %166 : vector<1x96xf32> to vector<6x96xf32>
    %168 = arith.addf %165, %167 : vector<6x96xf32>
    %169 = vector.extract_strided_slice %168 {offsets = [0, 0], sizes = [6, 32], strides = [1, 1]} : vector<6x96xf32> to vector<6x32xf32>
    %170 = vector.extract_strided_slice %168 {offsets = [0, 32], sizes = [6, 32], strides = [1, 1]} : vector<6x96xf32> to vector<6x32xf32>
    %171 = vector.extract_strided_slice %168 {offsets = [0, 64], sizes = [6, 32], strides = [1, 1]} : vector<6x96xf32> to vector<6x32xf32>
    %172 = vector.extract_strided_slice %170 {offsets = [0, 0], sizes = [2, 32], strides = [1, 1]} : vector<6x32xf32> to vector<2x32xf32>
    %173 = vector.extract_strided_slice %171 {offsets = [0, 0], sizes = [2, 32], strides = [1, 1]} : vector<6x32xf32> to vector<2x32xf32>
    %174 = tpu.concatenate %172, %172, %172 in 0 : vector<2x32xf32>, vector<2x32xf32>, vector<2x32xf32> -> vector<6x32xf32>
    %175 = tpu.concatenate %173, %173, %173 in 0 : vector<2x32xf32>, vector<2x32xf32>, vector<2x32xf32> -> vector<6x32xf32>
    %176 = arith.mulf %169, %174 : vector<6x32xf32>
    %cst_50 = arith.constant dense<0.000000e+00> : vector<6x32xf32>
    %177 = tpu.matmul %176, %53, %cst_50 {dimension_numbers = #tpu.dot_dimension_numbers<[1], [0], [0], [1], [0, 0, 1, 1], [], []>} : vector<6x32xf32>, vector<32x32xf32>, vector<6x32xf32> -> vector<6x32xf32>
    %178 = vector.extract_strided_slice %170 {offsets = [2, 0], sizes = [2, 32], strides = [1, 1]} : vector<6x32xf32> to vector<2x32xf32>
    %179 = vector.extract_strided_slice %171 {offsets = [2, 0], sizes = [2, 32], strides = [1, 1]} : vector<6x32xf32> to vector<2x32xf32>
    %180 = tpu.concatenate %178, %178, %178 in 0 : vector<2x32xf32>, vector<2x32xf32>, vector<2x32xf32> -> vector<6x32xf32>
    %181 = tpu.concatenate %179, %179, %179 in 0 : vector<2x32xf32>, vector<2x32xf32>, vector<2x32xf32> -> vector<6x32xf32>
    %182 = arith.mulf %169, %180 : vector<6x32xf32>
    %cst_51 = arith.constant dense<0.000000e+00> : vector<6x32xf32>
    %183 = tpu.matmul %182, %53, %cst_51 {dimension_numbers = #tpu.dot_dimension_numbers<[1], [0], [0], [1], [0, 0, 1, 1], [], []>} : vector<6x32xf32>, vector<32x32xf32>, vector<6x32xf32> -> vector<6x32xf32>
    %184 = vector.extract_strided_slice %170 {offsets = [4, 0], sizes = [2, 32], strides = [1, 1]} : vector<6x32xf32> to vector<2x32xf32>
    %185 = vector.extract_strided_slice %171 {offsets = [4, 0], sizes = [2, 32], strides = [1, 1]} : vector<6x32xf32> to vector<2x32xf32>
    %186 = tpu.concatenate %184, %184, %184 in 0 : vector<2x32xf32>, vector<2x32xf32>, vector<2x32xf32> -> vector<6x32xf32>
    %187 = tpu.concatenate %185, %185, %185 in 0 : vector<2x32xf32>, vector<2x32xf32>, vector<2x32xf32> -> vector<6x32xf32>
    %188 = arith.mulf %169, %186 : vector<6x32xf32>
    %cst_52 = arith.constant dense<0.000000e+00> : vector<6x32xf32>
    %189 = tpu.matmul %188, %53, %cst_52 {dimension_numbers = #tpu.dot_dimension_numbers<[1], [0], [0], [1], [0, 0, 1, 1], [], []>} : vector<6x32xf32>, vector<32x32xf32>, vector<6x32xf32> -> vector<6x32xf32>
    %190 = arith.maximumf %177, %183 : vector<6x32xf32>
    %191 = arith.maximumf %190, %189 : vector<6x32xf32>
    %192 = arith.subf %177, %191 : vector<6x32xf32>
    %193 = math.exp %192 : vector<6x32xf32>
    %194 = arith.subf %183, %191 : vector<6x32xf32>
    %195 = math.exp %194 : vector<6x32xf32>
    %196 = arith.subf %189, %191 : vector<6x32xf32>
    %197 = math.exp %196 : vector<6x32xf32>
    %198 = arith.addf %193, %195 : vector<6x32xf32>
    %199 = arith.addf %198, %197 : vector<6x32xf32>
    %200 = tpu.reciprocal %199 {approx = true} : vector<6x32xf32> -> vector<6x32xf32>
    %201 = arith.mulf %193, %175 : vector<6x32xf32>
    %202 = arith.mulf %195, %181 : vector<6x32xf32>
    %203 = arith.addf %201, %202 : vector<6x32xf32>
    %204 = arith.mulf %197, %187 : vector<6x32xf32>
    %205 = arith.addf %203, %204 : vector<6x32xf32>
    %206 = arith.mulf %205, %200 : vector<6x32xf32>
    %c264 = arith.constant 264 : index
    %c0_53 = arith.constant 0 : index
    %207 = vector.load %arg2[%c264, %c0_53] : memref<424x128xf32, #tpu.memory_space<vmem>>, vector<32x32xf32>
    %cst_54 = arith.constant dense<0.000000e+00> : vector<6x32xf32>
    %208 = tpu.matmul %206, %207, %cst_54 {dimension_numbers = #tpu.dot_dimension_numbers<[1], [0], [0], [1], [0, 0, 1, 1], [], []>} : vector<6x32xf32>, vector<32x32xf32>, vector<6x32xf32> -> vector<6x32xf32>
    %c11 = arith.constant 11 : index
    %c0_55 = arith.constant 0 : index
    %209 = vector.load %arg3[%c11, %c0_55] : memref<24x128xf32, #tpu.memory_space<vmem>>, vector<1x32xf32>
    %210 = vector.broadcast %209 : vector<1x32xf32> to vector<6x32xf32>
    %211 = arith.addf %208, %210 : vector<6x32xf32>
    %212 = arith.addf %163, %211 : vector<6x32xf32>
    %c12 = arith.constant 12 : index
    %c0_56 = arith.constant 0 : index
    %213 = vector.load %arg3[%c12, %c0_56] : memref<24x128xf32, #tpu.memory_space<vmem>>, vector<1x32xf32>
    %c13 = arith.constant 13 : index
    %c0_57 = arith.constant 0 : index
    %214 = vector.load %arg3[%c13, %c0_57] : memref<24x128xf32, #tpu.memory_space<vmem>>, vector<1x32xf32>
    %cst_58 = arith.constant dense<0.000000e+00> : vector<6xf32>
    %215 = vector.multi_reduction <add>, %212, %cst_58 [1] : vector<6x32xf32> to vector<6xf32>
    %216 = vector.shape_cast %215 : vector<6xf32> to vector<6x1xf32>
    %cst_59 = arith.constant 3.200000e+01 : f32
    %217 = vector.broadcast %cst_59 : f32 to vector<6x1xf32>
    %218 = arith.divf %216, %217 : vector<6x1xf32>
    %219 = vector.broadcast %218 : vector<6x1xf32> to vector<6x32xf32>
    %220 = arith.subf %212, %219 : vector<6x32xf32>
    %221 = arith.mulf %220, %220 : vector<6x32xf32>
    %cst_60 = arith.constant dense<0.000000e+00> : vector<6xf32>
    %222 = vector.multi_reduction <add>, %221, %cst_60 [1] : vector<6x32xf32> to vector<6xf32>
    %223 = vector.shape_cast %222 : vector<6xf32> to vector<6x1xf32>
    %cst_61 = arith.constant 3.200000e+01 : f32
    %224 = vector.broadcast %cst_61 : f32 to vector<6x1xf32>
    %225 = arith.divf %223, %224 : vector<6x1xf32>
    %226 = vector.broadcast %218 : vector<6x1xf32> to vector<6x32xf32>
    %227 = arith.subf %212, %226 : vector<6x32xf32>
    %cst_62 = arith.constant 9.99999974E-6 : f32
    %228 = vector.broadcast %cst_62 : f32 to vector<6x1xf32>
    %229 = arith.addf %225, %228 : vector<6x1xf32>
    %230 = math.rsqrt %229 : vector<6x1xf32>
    %231 = vector.broadcast %230 : vector<6x1xf32> to vector<6x32xf32>
    %232 = arith.mulf %227, %231 : vector<6x32xf32>
    %233 = vector.broadcast %213 : vector<1x32xf32> to vector<6x32xf32>
    %234 = arith.mulf %232, %233 : vector<6x32xf32>
    %235 = vector.broadcast %214 : vector<1x32xf32> to vector<6x32xf32>
    %236 = arith.addf %234, %235 : vector<6x32xf32>
    %c296 = arith.constant 296 : index
    %c0_63 = arith.constant 0 : index
    %237 = vector.load %arg2[%c296, %c0_63] : memref<424x128xf32, #tpu.memory_space<vmem>>, vector<32x64xf32>
    %cst_64 = arith.constant dense<0.000000e+00> : vector<6x64xf32>
    %238 = tpu.matmul %236, %237, %cst_64 {dimension_numbers = #tpu.dot_dimension_numbers<[1], [0], [0], [1], [0, 0, 1, 1], [], []>} : vector<6x32xf32>, vector<32x64xf32>, vector<6x64xf32> -> vector<6x64xf32>
    %c14 = arith.constant 14 : index
    %c0_65 = arith.constant 0 : index
    %239 = vector.load %arg3[%c14, %c0_65] : memref<24x128xf32, #tpu.memory_space<vmem>>, vector<1x64xf32>
    %240 = vector.broadcast %239 : vector<1x64xf32> to vector<6x64xf32>
    %241 = arith.addf %238, %240 : vector<6x64xf32>
    %cst_66 = arith.constant 0.000000e+00 : f32
    %242 = vector.broadcast %cst_66 : f32 to vector<6x64xf32>
    %243 = arith.maximumf %241, %242 : vector<6x64xf32>
    %c328 = arith.constant 328 : index
    %c0_67 = arith.constant 0 : index
    %244 = vector.load %arg2[%c328, %c0_67] : memref<424x128xf32, #tpu.memory_space<vmem>>, vector<64x32xf32>
    %cst_68 = arith.constant dense<0.000000e+00> : vector<6x32xf32>
    %245 = tpu.matmul %243, %244, %cst_68 {dimension_numbers = #tpu.dot_dimension_numbers<[1], [0], [0], [1], [0, 0, 1, 1], [], []>} : vector<6x64xf32>, vector<64x32xf32>, vector<6x32xf32> -> vector<6x32xf32>
    %c15 = arith.constant 15 : index
    %c0_69 = arith.constant 0 : index
    %246 = vector.load %arg3[%c15, %c0_69] : memref<24x128xf32, #tpu.memory_space<vmem>>, vector<1x32xf32>
    %247 = vector.broadcast %246 : vector<1x32xf32> to vector<6x32xf32>
    %248 = arith.addf %245, %247 : vector<6x32xf32>
    %249 = arith.addf %236, %248 : vector<6x32xf32>
    %c16 = arith.constant 16 : index
    %c0_70 = arith.constant 0 : index
    %250 = vector.load %arg3[%c16, %c0_70] : memref<24x128xf32, #tpu.memory_space<vmem>>, vector<1x32xf32>
    %c17 = arith.constant 17 : index
    %c0_71 = arith.constant 0 : index
    %251 = vector.load %arg3[%c17, %c0_71] : memref<24x128xf32, #tpu.memory_space<vmem>>, vector<1x32xf32>
    %cst_72 = arith.constant dense<0.000000e+00> : vector<6xf32>
    %252 = vector.multi_reduction <add>, %249, %cst_72 [1] : vector<6x32xf32> to vector<6xf32>
    %253 = vector.shape_cast %252 : vector<6xf32> to vector<6x1xf32>
    %cst_73 = arith.constant 3.200000e+01 : f32
    %254 = vector.broadcast %cst_73 : f32 to vector<6x1xf32>
    %255 = arith.divf %253, %254 : vector<6x1xf32>
    %256 = vector.broadcast %255 : vector<6x1xf32> to vector<6x32xf32>
    %257 = arith.subf %249, %256 : vector<6x32xf32>
    %258 = arith.mulf %257, %257 : vector<6x32xf32>
    %cst_74 = arith.constant dense<0.000000e+00> : vector<6xf32>
    %259 = vector.multi_reduction <add>, %258, %cst_74 [1] : vector<6x32xf32> to vector<6xf32>
    %260 = vector.shape_cast %259 : vector<6xf32> to vector<6x1xf32>
    %cst_75 = arith.constant 3.200000e+01 : f32
    %261 = vector.broadcast %cst_75 : f32 to vector<6x1xf32>
    %262 = arith.divf %260, %261 : vector<6x1xf32>
    %263 = vector.broadcast %255 : vector<6x1xf32> to vector<6x32xf32>
    %264 = arith.subf %249, %263 : vector<6x32xf32>
    %cst_76 = arith.constant 9.99999974E-6 : f32
    %265 = vector.broadcast %cst_76 : f32 to vector<6x1xf32>
    %266 = arith.addf %262, %265 : vector<6x1xf32>
    %267 = math.rsqrt %266 : vector<6x1xf32>
    %268 = vector.broadcast %267 : vector<6x1xf32> to vector<6x32xf32>
    %269 = arith.mulf %264, %268 : vector<6x32xf32>
    %270 = vector.broadcast %250 : vector<1x32xf32> to vector<6x32xf32>
    %271 = arith.mulf %269, %270 : vector<6x32xf32>
    %272 = vector.broadcast %251 : vector<1x32xf32> to vector<6x32xf32>
    %273 = arith.addf %271, %272 : vector<6x32xf32>
    %274 = vector.extract_strided_slice %273 {offsets = [0, 0], sizes = [2, 32], strides = [1, 1]} : vector<6x32xf32> to vector<2x32xf32>
    %275 = vector.extract_strided_slice %273 {offsets = [2, 0], sizes = [2, 32], strides = [1, 1]} : vector<6x32xf32> to vector<2x32xf32>
    %276 = arith.addf %274, %275 : vector<2x32xf32>
    %277 = vector.extract_strided_slice %273 {offsets = [4, 0], sizes = [2, 32], strides = [1, 1]} : vector<6x32xf32> to vector<2x32xf32>
    %278 = arith.addf %276, %277 : vector<2x32xf32>
    %cst_77 = arith.constant 0.333333343 : f32
    %279 = vector.broadcast %cst_77 : f32 to vector<2x32xf32>
    %280 = arith.mulf %278, %279 : vector<2x32xf32>
    %c392 = arith.constant 392 : index
    %c0_78 = arith.constant 0 : index
    %281 = vector.load %arg2[%c392, %c0_78] : memref<424x128xf32, #tpu.memory_space<vmem>>, vector<32x128xf32>
    %cst_79 = arith.constant dense<0.000000e+00> : vector<2x128xf32>
    %282 = tpu.matmul %280, %281, %cst_79 {dimension_numbers = #tpu.dot_dimension_numbers<[1], [0], [0], [1], [0, 0, 1, 1], [], []>} : vector<2x32xf32>, vector<32x128xf32>, vector<2x128xf32> -> vector<2x128xf32>
    %c18 = arith.constant 18 : index
    %c0_80 = arith.constant 0 : index
    %283 = vector.load %arg3[%c18, %c0_80] : memref<24x128xf32, #tpu.memory_space<vmem>>, vector<1x128xf32>
    %284 = vector.broadcast %283 : vector<1x128xf32> to vector<2x128xf32>
    %285 = arith.addf %282, %284 : vector<2x128xf32>
    %cst_81 = arith.constant dense<0xFF800000> : vector<2xf32>
    %286 = vector.multi_reduction <maximumf>, %285, %cst_81 [1] : vector<2x128xf32> to vector<2xf32>
    %287 = vector.shape_cast %286 : vector<2xf32> to vector<2x1xf32>
    %288 = vector.broadcast %287 : vector<2x1xf32> to vector<2x128xf32>
    %289 = arith.subf %285, %288 : vector<2x128xf32>
    %290 = math.exp %289 : vector<2x128xf32>
    %cst_82 = arith.constant dense<0.000000e+00> : vector<2xf32>
    %291 = vector.multi_reduction <add>, %290, %cst_82 [1] : vector<2x128xf32> to vector<2xf32>
    %292 = vector.shape_cast %291 : vector<2xf32> to vector<2x1xf32>
    %293 = vector.broadcast %292 : vector<2x1xf32> to vector<2x128xf32>
    %294 = arith.divf %290, %293 : vector<2x128xf32>
    %c0_83 = arith.constant 0 : index
    %c0_84 = arith.constant 0 : index
    %295 = vector.load %arg4[%c0_83, %c0_84] : memref<2x128xf32, #tpu.memory_space<vmem>>, vector<2x128xf32>
    tpu.vector_store %arg4[%c0_83, %c0_84], %294 {strides = array<i32>} : memref<2x128xf32, #tpu.memory_space<vmem>>, vector<2x128xf32>,
    return
  }
  func.func @transform_0(%arg0: i32) -> (i32, i32) {
    %c0_i32 = arith.constant 0 : i32
    %c0_i32_0 = arith.constant 0 : i32
    return %arg0, %c0_i32 : i32, i32
  }
  func.func @transform_1(%arg0: i32) -> (i32, i32) {
    %c0_i32 = arith.constant 0 : i32
    %c0_i32_0 = arith.constant 0 : i32
    %c0_i32_1 = arith.constant 0 : i32
    return %c0_i32, %c0_i32_0 : i32, i32
  }
  func.func @transform_2(%arg0: i32) -> (i32, i32) {
    %c0_i32 = arith.constant 0 : i32
    %c0_i32_0 = arith.constant 0 : i32
    %c0_i32_1 = arith.constant 0 : i32
    return %c0_i32, %c0_i32_0 : i32, i32
  }
  func.func @transform_3(%arg0: i32) -> (i32, i32) {
    %c0_i32 = arith.constant 0 : i32
    %c0_i32_0 = arith.constant 0 : i32
    return %arg0, %c0_i32 : i32, i32
  }
}

</mosaic_0001>

<llo_original>
// kernel: tpu_custom_call.1
$region0: #{tpu_custom_call.1}
  #allocation0 [shape = 'u32[]', space=smem, size = 0x4, offset = 0x4, fixed_abs, tag = 'smem constant byte address 0x4 - core index']
  #allocation1 [shape = 'u32[72,128]{1,0:T(1,128)}', space=vmem, size = 0x9000, scoped, tag = 'internal scratch']
  %s0 = inlined_call_operand.hbm [shape: f32[2,128], index: 0, kind: input, shape index: {}]
  %s1 = inlined_call_operand.hbm [shape: f32[424,128], index: 1, kind: input, shape index: {}]
  %s2 = inlined_call_operand.hbm [shape: f32[24,128], index: 2, kind: input, shape index: {}]
  %s3 = inlined_call_operand.hbm [shape: f32[2,128], index: 3, kind: output, shape index: {}]
  %s4 = sld [smem:[#allocation0]]
  $region34: #{tpu_custom_call.1} parent=0
    _
  %s6 = ssub.s32 1, %s4
  %s7 = scalar_select 0, %s6, %s4
  $region1: #{tpu_custom_call.1} parent=0
    #allocation2 [shape = 'u8[1024]{0}', space=vmem, size = 0x400, scoped, tag = 'input window, operand 0, single buffered']
    #allocation3 [shape = 's32[1]{0}', space=sflag, size = 0x4, scoped, tag = 'scoped memory for tpu_custom_call.1']
    #allocation4 [shape = 's32[1]{0}', space=sflag, size = 0x4, scoped, tag = 'scoped memory for tpu_custom_call.1']
    #allocation5 [shape = 'u8[217088]{0}', space=vmem, size = 0x35000, scoped, tag = 'input window, operand 1, single buffered']
    #allocation6 [shape = 's32[1]{0}', space=sflag, size = 0x4, scoped, tag = 'scoped memory for tpu_custom_call.1']
    #allocation7 [shape = 'u8[12288]{0}', space=vmem, size = 0x3000, scoped, tag = 'input window, operand 2, single buffered']
    #allocation8 [shape = 'u8[1024]{0}', space=vmem, size = 0x400, scoped, tag = 'output window, operand 0, single buffered']
    %8 = vsyncpa [#allocation3], 0
    %9 = vsyncpa [#allocation6], 0
    %10 = vsyncpa [#allocation4], 0
    // Predicated region
    $region2: #{tpu_custom_call.1} parent=1 // pred_check
      _
    $region3: #{tpu_custom_call.1} parent=1 // pred_check_branch
      %12 = sbr.rel (0) target = $region5
    $region4: #{tpu_custom_call.1} parent=1 // pred_region
      %14 = vsyncadd [#allocation3], 0
      %s16 = sshll.u32 %s0, 4
      %s17 = int_to_ptr.hbm [resolvable:$true] %s16
      %s18 = sshll.u32 [#allocation2], 4
      %s19 = int_to_ptr.vmem [resolvable:$true] %s18
      %21 = dma.hbm_to_vmem [thread:$0]  %s17, 32, %s19, [#allocation3]
    $region5: #{tpu_custom_call.1} parent=1 // pred_fallthru
      _
    // Predicated region
    $region6: #{tpu_custom_call.1} parent=1 // pred_check
      _
    $region7: #{tpu_custom_call.1} parent=1 // pred_check_branch
      %23 = sbr.rel (0) target = $region9
    $region8: #{tpu_custom_call.1} parent=1 // pred_region
      %25 = vsyncadd [#allocation6], 0
      %s26 = sshll.u32 %s1, 4
      %s27 = int_to_ptr.hbm [resolvable:$true] %s26
      %s28 = sshll.u32 [#allocation5], 4
      %s29 = int_to_ptr.vmem [resolvable:$true] %s28
      %34 = dma.hbm_to_vmem [thread:$0]  %s27, 6784, %s29, [#allocation6], 128, 128, 8
    $region9: #{tpu_custom_call.1} parent=1 // pred_fallthru
      _
    // Predicated region
    $region10: #{tpu_custom_call.1} parent=1 // pred_check
      _
    $region11: #{tpu_custom_call.1} parent=1 // pred_check_branch
      %36 = sbr.rel (0) target = $region13
    $region12: #{tpu_custom_call.1} parent=1 // pred_region
      %38 = vsyncadd [#allocation6], 0
      %s39 = sshll.u32 %s2, 4
      %s40 = int_to_ptr.hbm [resolvable:$true] %s39
      %s41 = sshll.u32 [#allocation7], 4
      %s42 = int_to_ptr.vmem [resolvable:$true] %s41
      %47 = dma.hbm_to_vmem [thread:$0]  %s40, 384, %s42, [#allocation6], 128, 128, 8
    $region13: #{tpu_custom_call.1} parent=1 // pred_fallthru
      _
    // Predicated region
    $region14: #{tpu_custom_call.1} parent=1 // pred_check
      _
    $region15: #{tpu_custom_call.1} parent=1 // pred_check_branch
      %49 = sbr.rel (0) target = $region17
    $region16: #{tpu_custom_call.1} parent=1 // pred_region
      %51 = dma.done [#allocation3], 32
    $region17: #{tpu_custom_call.1} parent=1 // pred_fallthru
      _
    // Predicated region
    $region18: #{tpu_custom_call.1} parent=1 // pred_check
      _
    $region19: #{tpu_custom_call.1} parent=1 // pred_check_branch
      %53 = sbr.rel (0) target = $region21
    $region20: #{tpu_custom_call.1} parent=1 // pred_region
      %55 = dma.done [#allocation6], 6784
    $region21: #{tpu_custom_call.1} parent=1 // pred_fallthru
      _
    // Predicated region
    $region22: #{tpu_custom_call.1} parent=1 // pred_check
      _
    $region23: #{tpu_custom_call.1} parent=1 // pred_check_branch
      %57 = sbr.rel (0) target = $region25
    $region24: #{tpu_custom_call.1} parent=1 // pred_region
      %59 = dma.done [#allocation6], 384
    $region25: #{tpu_custom_call.1} parent=1 // pred_fallthru
      _
    %v60 = vld [vmem:[#allocation2] sm:$0x3]
    %v61 = vld [vmem:[#allocation5 + $0x20] sm:$0xff]
    %v62 = vld [vmem:[#allocation5 + $0x28] sm:$0xff]
    %v63 = vld [vmem:[#allocation7] sm:$0x1]
    %v64 = vperm.slane %v63, 0
    %66 = vrot.lane.b32.xlu0 %v60, 96
    %v67 = vpop.permute.xlu0 %66
    %vm68 = vcmask 130048
    %v69 = vsel %vm68, %v67, 0
    %71 = vmatpush.msra.mxu0 0.0
    %72 = vmatpush.msra.mxu0 0.0
    %73 = vmatpush.msra.mxu0 0.0
    %74 = vmatpush.msra.mxu0 0.0
    %75 = vmatpush.msra.mxu0 0.0
    %76 = vmatpush.msra.mxu0 0.0
    %77 = vmatpush.msra.mxu0 0.0
    %78 = vmatpush.msra.mxu0 0.0
    %79 = vmatpush.msra.mxu0 0.0
    %80 = vmatpush.msra.mxu0 0.0
    %81 = vmatpush.msra.mxu0 0.0
    %82 = vmatpush.msra.mxu0 0.0
    %83 = vmatpush.msra.mxu0 0.0
    %84 = vmatpush.msra.mxu0 0.0
    %85 = vmatpush.msra.mxu0 %v62
    %86 = vmatpush.msra.mxu0 %v61
    %87 = vmatmul.f32.gmra.mxu0 %v69
    %v88 = vpop.f32.mrf.mxu0
    %v89 = vadd.f32 %v64, %v88
    %90 = vdwg.mxu0
    %v91 = vsub.f32 0.0, %v89
    %v92 = vmul.f32 %v91, 1.442695
    %v93 = vpow.pop %v92
    %v94 = vadd.f32 %v93, 1.0
    %v95 = vrcp.pop %v94
    %v96 = vtanh.pop %v89
    %98 = vrot.lane.b32.xlu0 %v96, 96
    %v99 = vpop.permute.xlu0 %98
    %v101 = vmul.f32 %v95, %v99
    %v102 = vtanh.pop %v101
    %104 = vrot.lane.b32.xlu0 %v102, 64
    %v105 = vpop.permute.xlu0 %104
    %v107 = vmul.f32 %v95, %v105
    %v108 = vld [vmem:[#allocation5 + $0x30] sm:$0xff]
    %v109 = vld [vmem:[#allocation5 + $0x38] sm:$0xff]
    %v110 = vld [vmem:[#allocation5 + $0x40] sm:$0xff]
    %v111 = vld [vmem:[#allocation7 + $0x1] sm:$0x1]
    %v112 = vperm.slane %v111, 0
    %113 = vrot.lane.b32.xlu0 %v60, 80
    %v114 = vpop.permute.xlu0 %113
    %vm115 = vcmask 195584
    %v116 = vsel %vm115, %v114, 0
    %118 = vmatpush.msra.mxu0 0.0
    %119 = vmatpush.msra.mxu0 0.0
    %120 = vmatpush.msra.mxu0 0.0
    %121 = vmatpush.msra.mxu0 0.0
    %122 = vmatpush.msra.mxu0 0.0
    %123 = vmatpush.msra.mxu0 0.0
    %124 = vmatpush.msra.mxu0 0.0
    %125 = vmatpush.msra.mxu0 0.0
    %126 = vmatpush.msra.mxu0 0.0
    %127 = vmatpush.msra.mxu0 0.0
    %128 = vmatpush.msra.mxu0 0.0
    %129 = vmatpush.msra.mxu0 0.0
    %130 = vmatpush.msra.mxu0 0.0
    %131 = vmatpush.msra.mxu0 %v110
    %132 = vmatpush.msra.mxu0 %v109
    %133 = vmatpush.msra.mxu0 %v108
    %134 = vmatmul.f32.gmra.mxu0 %v116
    %v135 = vpop.f32.mrf.mxu0
    %v136 = vadd.f32 %v112, %v135
    %137 = vdwg.mxu0
    %v138 = vsub.f32 0.0, %v136
    %v139 = vmul.f32 %v138, 1.442695
    %v140 = vpow.pop %v139
    %v141 = vadd.f32 %v140, 1.0
    %v142 = vrcp.pop %v141
    %v143 = vtanh.pop %v136
    %145 = vrot.lane.b32.xlu0 %v143, 96
    %v146 = vpop.permute.xlu0 %145
    %v148 = vmul.f32 %v142, %v146
    %v149 = vtanh.pop %v148
    %151 = vrot.lane.b32.xlu0 %v149, 64
    %v152 = vpop.permute.xlu0 %151
    %v154 = vmul.f32 %v142, %v152
    %v156 = vrot.slane %v107, 6
    %157 = vrot.lane.b32.xlu0 %v156, 64
    %v158 = vpop.permute.xlu0 %157
    %v161 = vrot.slane %v154, 4
    %162 = vrot.lane.b32.xlu0 %v161, 64
    %v163 = vpop.permute.xlu0 %162
    %vm165 = vcmask 1041408
    %v166 = vsel %vm165, %v60, %v158
    %vm167 = vcmask 1043456
    %v168 = vsel %vm167, %v166, %v163
    %v169 = vld [vmem:[#allocation5] sm:$0xff]
    %v170 = vld [vmem:[#allocation5 + $0x8] sm:$0xff]
    %v171 = vld [vmem:[#allocation5 + $0x10] sm:$0xff]
    %v172 = vld [vmem:[#allocation5 + $0x18] sm:$0xff]
    %v173 = vld [vmem:[#allocation5 + $0x48] sm:$0xff]
    %v174 = vld [vmem:[#allocation5 + $0x50] sm:$0xff]
    %v175 = vld [vmem:[#allocation5 + $0x58] sm:$0xff]
    %v176 = vld [vmem:[#allocation5 + $0x60] sm:$0xff]
    %v177 = vld [vmem:[#allocation7 + $0x2] sm:$0x1]
    %v178 = vperm.slane %v177, 0
    %vm179 = vcmask 261120
    %v181 = vsel %vm179, %v168, 0
    %183 = vmatpush.msra.mxu0 0.0
    %184 = vmatpush.msra.mxu0 0.0
    %185 = vmatpush.msra.mxu0 0.0
    %186 = vmatpush.msra.mxu0 0.0
    %187 = vmatpush.msra.mxu0 0.0
    %188 = vmatpush.msra.mxu0 0.0
    %189 = vmatpush.msra.mxu0 0.0
    %190 = vmatpush.msra.mxu0 0.0
    %191 = vmatpush.msra.mxu0 0.0
    %192 = vmatpush.msra.mxu0 0.0
    %193 = vmatpush.msra.mxu0 0.0
    %194 = vmatpush.msra.mxu0 0.0
    %195 = vmatpush.msra.mxu0 %v176
    %196 = vmatpush.msra.mxu0 %v175
    %197 = vmatpush.msra.mxu0 %v174
    %198 = vmatpush.msra.mxu0 %v173
    %199 = vmatmul.f32.gmra.mxu0 %v181
    %v200 = vpop.f32.mrf.mxu0
    %v201 = vadd.f32 %v178, %v200
    %202 = vdwg.mxu0
    %v204 = vrot.slane %v201, 6
    %v206 = vrot.slane %v201, 4
    %v208 = vsel %vm165, %v201, %v204
    %v209 = vsel %vm167, %v208, %v206
    %211 = vrot.lane.b32.xlu0 %v209, 96
    %v212 = vpop.permute.xlu0 %211
    %v214 = vmul.f32 %v201, %v212
    %v216 = vsel %vm179, %v214, 0
    %218 = vmatpush.msra.mxu0 0.0
    %219 = vmatpush.msra.mxu0 0.0
    %220 = vmatpush.msra.mxu0 0.0
    %221 = vmatpush.msra.mxu0 0.0
    %222 = vmatpush.msra.mxu0 0.0
    %223 = vmatpush.msra.mxu0 0.0
    %224 = vmatpush.msra.mxu0 0.0
    %225 = vmatpush.msra.mxu0 0.0
    %226 = vmatpush.msra.mxu0 0.0
    %227 = vmatpush.msra.mxu0 0.0
    %228 = vmatpush.msra.mxu0 0.0
    %229 = vmatpush.msra.mxu0 0.0
    %230 = vmatpush.msra.mxu0 %v172
    %231 = vmatpush.msra.mxu0 %v171
    %232 = vmatpush.msra.mxu0 %v170
    %233 = vmatpush.msra.mxu0 %v169
    %234 = vmatmul.f32.gmra.mxu0 %v216
    %v235 = vpop.f32.mrf.mxu0
    %v236 = vadd.f32 0.0, %v235
    %237 = vdwg.mxu0
    %v238 = vrot.slane %v201, 2
    %v240 = vsel %vm165, %v238, %v201
    %v241 = vsel %vm167, %v240, %v204
    %243 = vrot.lane.b32.xlu0 %v241, 96
    %v244 = vpop.permute.xlu0 %243
    %v246 = vmul.f32 %v201, %v244
    %v248 = vsel %vm179, %v246, 0
    %250 = vmatpush.msra.mxu0 0.0
    %251 = vmatpush.msra.mxu0 0.0
    %252 = vmatpush.msra.mxu0 0.0
    %253 = vmatpush.msra.mxu0 0.0
    %254 = vmatpush.msra.mxu0 0.0
    %255 = vmatpush.msra.mxu0 0.0
    %256 = vmatpush.msra.mxu0 0.0
    %257 = vmatpush.msra.mxu0 0.0
    %258 = vmatpush.msra.mxu0 0.0
    %259 = vmatpush.msra.mxu0 0.0
    %260 = vmatpush.msra.mxu0 0.0
    %261 = vmatpush.msra.mxu0 0.0
    %262 = vmatpush.msra.mxu0 %v172
    %263 = vmatpush.msra.mxu0 %v171
    %264 = vmatpush.msra.mxu0 %v170
    %265 = vmatpush.msra.mxu0 %v169
    %266 = vmatmul.f32.gmra.mxu0 %v248
    %v267 = vpop.f32.mrf.mxu0
    %v268 = vadd.f32 0.0, %v267
    %269 = vdwg.mxu0
    %v270 = vsel %vm165, %v206, %v238
    %v271 = vsel %vm167, %v270, %v201
    %273 = vrot.lane.b32.xlu0 %v271, 96
    %v274 = vpop.permute.xlu0 %273
    %v276 = vmul.f32 %v201, %v274
    %v278 = vsel %vm179, %v276, 0
    %280 = vmatpush.msra.mxu0 0.0
    %281 = vmatpush.msra.mxu0 0.0
    %282 = vmatpush.msra.mxu0 0.0
    %283 = vmatpush.msra.mxu0 0.0
    %284 = vmatpush.msra.mxu0 0.0
    %285 = vmatpush.msra.mxu0 0.0
    %286 = vmatpush.msra.mxu0 0.0
    %287 = vmatpush.msra.mxu0 0.0
    %288 = vmatpush.msra.mxu0 0.0
    %289 = vmatpush.msra.mxu0 0.0
    %290 = vmatpush.msra.mxu0 0.0
    %291 = vmatpush.msra.mxu0 0.0
    %292 = vmatpush.msra.mxu0 %v172
    %293 = vmatpush.msra.mxu0 %v171
    %294 = vmatpush.msra.mxu0 %v170
    %295 = vmatpush.msra.mxu0 %v169
    %296 = vmatmul.f32.gmra.mxu0 %v278
    %v297 = vpop.f32.mrf.mxu0
    %v298 = vadd.f32 0.0, %v297
    %299 = vdwg.mxu0
    %v300 = vmax.f32 %v236, %v268
    %v301 = vmax.f32 %v300, %v298
    %v302 = vsub.f32 %v236, %v301
    %v303 = vmul.f32 %v302, 1.442695
    %v304 = vpow.pop %v303
    %v305 = vsub.f32 %v268, %v301
    %v306 = vmul.f32 %v305, 1.442695
    %v307 = vpow.pop %v306
    %v308 = vsub.f32 %v298, %v301
    %v309 = vmul.f32 %v308, 1.442695
    %v310 = vpow.pop %v309
    %v311 = vadd.f32 %v304, %v307
    %v312 = vadd.f32 %v311, %v310
    %v313 = vrcp.pop %v312
    %314 = vrot.lane.b32.xlu0 %v209, 64
    %v315 = vpop.permute.xlu0 %314
    %v317 = vmul.f32 %v304, %v315
    %318 = vrot.lane.b32.xlu0 %v241, 64
    %v319 = vpop.permute.xlu0 %318
    %v321 = vmul.f32 %v307, %v319
    %v322 = vadd.f32 %v317, %v321
    %323 = vrot.lane.b32.xlu0 %v271, 64
    %v324 = vpop.permute.xlu0 %323
    %v326 = vmul.f32 %v310, %v324
    %v327 = vadd.f32 %v322, %v326
    %v328 = vmul.f32 %v327, %v313
    %v329 = vld [vmem:[#allocation5 + $0x68] sm:$0xff]
    %v330 = vld [vmem:[#allocation5 + $0x70] sm:$0xff]
    %v331 = vld [vmem:[#allocation5 + $0x78] sm:$0xff]
    %v332 = vld [vmem:[#allocation5 + $0x80] sm:$0xff]
    %v333 = vld [vmem:[#allocation7 + $0x3] sm:$0x1]
    %v334 = vperm.slane %v333, 0
    %v336 = vsel %vm179, %v328, 0
    %338 = vmatpush.msra.mxu0 0.0
    %339 = vmatpush.msra.mxu0 0.0
    %340 = vmatpush.msra.mxu0 0.0
    %341 = vmatpush.msra.mxu0 0.0
    %342 = vmatpush.msra.mxu0 0.0
    %343 = vmatpush.msra.mxu0 0.0
    %344 = vmatpush.msra.mxu0 0.0
    %345 = vmatpush.msra.mxu0 0.0
    %346 = vmatpush.msra.mxu0 0.0
    %347 = vmatpush.msra.mxu0 0.0
    %348 = vmatpush.msra.mxu0 0.0
    %349 = vmatpush.msra.mxu0 0.0
    %350 = vmatpush.msra.mxu0 %v332
    %351 = vmatpush.msra.mxu0 %v331
    %352 = vmatpush.msra.mxu0 %v330
    %353 = vmatpush.msra.mxu0 %v329
    %354 = vmatmul.f32.gmra.mxu0 %v336
    %v355 = vpop.f32.mrf.mxu0
    %v356 = vadd.f32 %v334, %v355
    %357 = vdwg.mxu0
    %v358 = vadd.f32 %v168, %v356
    %v359 = vld [vmem:[#allocation7 + $0x4] sm:$0x1]
    %v360 = vld [vmem:[#allocation7 + $0x5] sm:$0x1]
    %vm361 = vcmask 259072
    %v362 = vsel %vm361, %v358, 0.0
    %363 = vadd.xlane.f32.xlu0 %v362
    %v364 = vpop.xlane.xlu0 %363
    %v365 = vrcp.pop 32.0
    %v366 = vmul.f32 32.0, %v365
    %v367 = vsub.f32 1.0, %v366
    %v368 = vmul.f32 %v365, %v367
    %v369 = vadd.f32 %v365, %v368
    %vm370 = vweird.f32 %v365
    %v371 = vsel %vm370, %v365, %v369
    %v372 = vmul.f32 %v364, %v371
    %v373 = vsub.f32 %v358, %v372
    %v374 = vmul.f32 %v373, %v373
    %v375 = vsel %vm361, %v374, 0.0
    %376 = vadd.xlane.f32.xlu0 %v375
    %v377 = vpop.xlane.xlu0 %376
    %v378 = vmul.f32 %v377, %v371
    %v379 = vadd.f32 %v378, 1e-05
    %v380 = vrsqrt.pop %v379
    %v381 = vmul.f32 %v380, %v379
    %v382 = vmul.f32 %v381, %v380
    %v383 = vmul.f32 0.5, %v382
    %v384 = vsub.f32 1.5, %v383
    %v385 = vmul.f32 %v380, %v384
    %vm386 = vweird.f32 %v379
    %vm387 = vweird.f32 %v380
    %vm388 = vmor %vm386, %vm387
    %v389 = vsel %vm388, %v380, %v385
    %v390 = vmul.f32 %v373, %v389
    %v391 = vperm.slane %v359, 0
    %v392 = vmul.f32 %v390, %v391
    %v393 = vperm.slane %v360, 0
    %v394 = vadd.f32 %v392, %v393
    %v395 = vld [vmem:[#allocation5 + $0x88] sm:$0xff]
    %v396 = vld [vmem:[#allocation5 + $0x90] sm:$0xff]
    %v397 = vld [vmem:[#allocation5 + $0x98] sm:$0xff]
    %v398 = vld [vmem:[#allocation5 + $0xa0] sm:$0xff]
    %v399 = vld [vmem:[#allocation7 + $0x6] sm:$0x1]
    %v400 = vperm.slane %v399, 0
    %v402 = vsel %vm179, %v394, 0
    %404 = vmatpush.msra.mxu0 0.0
    %405 = vmatpush.msra.mxu0 0.0
    %406 = vmatpush.msra.mxu0 0.0
    %407 = vmatpush.msra.mxu0 0.0
    %408 = vmatpush.msra.mxu0 0.0
    %409 = vmatpush.msra.mxu0 0.0
    %410 = vmatpush.msra.mxu0 0.0
    %411 = vmatpush.msra.mxu0 0.0
    %412 = vmatpush.msra.mxu0 0.0
    %413 = vmatpush.msra.mxu0 0.0
    %414 = vmatpush.msra.mxu0 0.0
    %415 = vmatpush.msra.mxu0 0.0
    %416 = vmatpush.msra.mxu0 %v398
    %417 = vmatpush.msra.mxu0 %v397
    %418 = vmatpush.msra.mxu0 %v396
    %419 = vmatpush.msra.mxu0 %v395
    %420 = vmatmul.f32.gmra.mxu0 %v402
    %v421 = vpop.f32.mrf.mxu0
    %v422 = vadd.f32 %v400, %v421
    %423 = vdwg.mxu0
    %v424 = vmax.f32 %v422, 0.0
    %v425 = vld [vmem:[#allocation5 + $0xa8] sm:$0xff]
    %v426 = vld [vmem:[#allocation5 + $0xb0] sm:$0xff]
    %v427 = vld [vmem:[#allocation5 + $0xb8] sm:$0xff]
    %v428 = vld [vmem:[#allocation5 + $0xc0] sm:$0xff]
    %v429 = vld [vmem:[#allocation5 + $0xc8] sm:$0xff]
    %v430 = vld [vmem:[#allocation5 + $0xd0] sm:$0xff]
    %v431 = vld [vmem:[#allocation5 + $0xd8] sm:$0xff]
    %v432 = vld [vmem:[#allocation5 + $0xe0] sm:$0xff]
    %v433 = vld [vmem:[#allocation7 + $0x7] sm:$0x1]
    %v434 = vperm.slane %v433, 0
    %vm435 = vcmask 523264
    %v437 = vsel %vm435, %v424, 0
    %439 = vmatpush.msra.mxu0 0.0
    %440 = vmatpush.msra.mxu0 0.0
    %441 = vmatpush.msra.mxu0 0.0
    %442 = vmatpush.msra.mxu0 0.0
    %443 = vmatpush.msra.mxu0 0.0
    %444 = vmatpush.msra.mxu0 0.0
    %445 = vmatpush.msra.mxu0 0.0
    %446 = vmatpush.msra.mxu0 0.0
    %447 = vmatpush.msra.mxu0 %v432
    %448 = vmatpush.msra.mxu0 %v431
    %449 = vmatpush.msra.mxu0 %v430
    %450 = vmatpush.msra.mxu0 %v429
    %451 = vmatpush.msra.mxu0 %v428
    %452 = vmatpush.msra.mxu0 %v427
    %453 = vmatpush.msra.mxu0 %v426
    %454 = vmatpush.msra.mxu0 %v425
    %455 = vmatmul.f32.gmra.mxu0 %v437
    %v456 = vpop.f32.mrf.mxu0
    %v457 = vadd.f32 %v434, %v456
    %458 = vdwg.mxu0
    %v459 = vadd.f32 %v394, %v457
    %v460 = vld [vmem:[#allocation7 + $0x8] sm:$0x1]
    %v461 = vld [vmem:[#allocation7 + $0x9] sm:$0x1]
    %v462 = vsel %vm361, %v459, 0.0
    %463 = vadd.xlane.f32.xlu0 %v462
    %v464 = vpop.xlane.xlu0 %463
    %v465 = vmul.f32 %v464, %v371
    %v466 = vsub.f32 %v459, %v465
    %v467 = vmul.f32 %v466, %v466
    %v468 = vsel %vm361, %v467, 0.0
    %469 = vadd.xlane.f32.xlu0 %v468
    %v470 = vpop.xlane.xlu0 %469
    %v471 = vmul.f32 %v470, %v371
    %v472 = vadd.f32 %v471, 1e-05
    %v473 = vrsqrt.pop %v472
    %v474 = vmul.f32 %v473, %v472
    %v475 = vmul.f32 %v474, %v473
    %v476 = vmul.f32 0.5, %v475
    %v477 = vsub.f32 1.5, %v476
    %v478 = vmul.f32 %v473, %v477
    %vm479 = vweird.f32 %v472
    %vm480 = vweird.f32 %v473
    %vm481 = vmor %vm479, %vm480
    %v482 = vsel %vm481, %v473, %v478
    %v483 = vmul.f32 %v466, %v482
    %v484 = vperm.slane %v460, 0
    %v485 = vmul.f32 %v483, %v484
    %v486 = vperm.slane %v461, 0
    %v487 = vadd.f32 %v485, %v486
    %v488 = vld [vmem:[#allocation5 + $0xe8] sm:$0xff]
    %v489 = vld [vmem:[#allocation5 + $0xf0] sm:$0xff]
    %v490 = vld [vmem:[#allocation5 + $0xf8] sm:$0xff]
    %v491 = vld [vmem:[#allocation5 + $0x100] sm:$0xff]
    %v492 = vld [vmem:[#allocation7 + $0xa] sm:$0x1]
    %v493 = vperm.slane %v492, 0
    %v495 = vsel %vm179, %v487, 0
    %497 = vmatpush.msra.mxu0 0.0
    %498 = vmatpush.msra.mxu0 0.0
    %499 = vmatpush.msra.mxu0 0.0
    %500 = vmatpush.msra.mxu0 0.0
    %501 = vmatpush.msra.mxu0 0.0
    %502 = vmatpush.msra.mxu0 0.0
    %503 = vmatpush.msra.mxu0 0.0
    %504 = vmatpush.msra.mxu0 0.0
    %505 = vmatpush.msra.mxu0 0.0
    %506 = vmatpush.msra.mxu0 0.0
    %507 = vmatpush.msra.mxu0 0.0
    %508 = vmatpush.msra.mxu0 0.0
    %509 = vmatpush.msra.mxu0 %v491
    %510 = vmatpush.msra.mxu0 %v490
    %511 = vmatpush.msra.mxu0 %v489
    %512 = vmatpush.msra.mxu0 %v488
    %513 = vmatmul.f32.gmra.mxu0 %v495
    %v514 = vpop.f32.mrf.mxu0
    %v515 = vadd.f32 %v493, %v514
    %516 = vdwg.mxu0
    %v518 = vrot.slane %v515, 6
    %v520 = vrot.slane %v515, 4
    %v522 = vsel %vm165, %v515, %v518
    %v523 = vsel %vm167, %v522, %v520
    %525 = vrot.lane.b32.xlu0 %v523, 96
    %v526 = vpop.permute.xlu0 %525
    %v528 = vmul.f32 %v515, %v526
    %v530 = vsel %vm179, %v528, 0
    %532 = vmatpush.msra.mxu0 0.0
    %533 = vmatpush.msra.mxu0 0.0
    %534 = vmatpush.msra.mxu0 0.0
    %535 = vmatpush.msra.mxu0 0.0
    %536 = vmatpush.msra.mxu0 0.0
    %537 = vmatpush.msra.mxu0 0.0
    %538 = vmatpush.msra.mxu0 0.0
    %539 = vmatpush.msra.mxu0 0.0
    %540 = vmatpush.msra.mxu0 0.0
    %541 = vmatpush.msra.mxu0 0.0
    %542 = vmatpush.msra.mxu0 0.0
    %543 = vmatpush.msra.mxu0 0.0
    %544 = vmatpush.msra.mxu0 %v172
    %545 = vmatpush.msra.mxu0 %v171
    %546 = vmatpush.msra.mxu0 %v170
    %547 = vmatpush.msra.mxu0 %v169
    %548 = vmatmul.f32.gmra.mxu0 %v530
    %v549 = vpop.f32.mrf.mxu0
    %v550 = vadd.f32 0.0, %v549
    %551 = vdwg.mxu0
    %v552 = vrot.slane %v515, 2
    %v554 = vsel %vm165, %v552, %v515
    %v555 = vsel %vm167, %v554, %v518
    %557 = vrot.lane.b32.xlu0 %v555, 96
    %v558 = vpop.permute.xlu0 %557
    %v560 = vmul.f32 %v515, %v558
    %v562 = vsel %vm179, %v560, 0
    %564 = vmatpush.msra.mxu0 0.0
    %565 = vmatpush.msra.mxu0 0.0
    %566 = vmatpush.msra.mxu0 0.0
    %567 = vmatpush.msra.mxu0 0.0
    %568 = vmatpush.msra.mxu0 0.0
    %569 = vmatpush.msra.mxu0 0.0
    %570 = vmatpush.msra.mxu0 0.0
    %571 = vmatpush.msra.mxu0 0.0
    %572 = vmatpush.msra.mxu0 0.0
    %573 = vmatpush.msra.mxu0 0.0
    %574 = vmatpush.msra.mxu0 0.0
    %575 = vmatpush.msra.mxu0 0.0
    %576 = vmatpush.msra.mxu0 %v172
    %577 = vmatpush.msra.mxu0 %v171
    %578 = vmatpush.msra.mxu0 %v170
    %579 = vmatpush.msra.mxu0 %v169
    %580 = vmatmul.f32.gmra.mxu0 %v562
    %v581 = vpop.f32.mrf.mxu0
    %v582 = vadd.f32 0.0, %v581
    %583 = vdwg.mxu0
    %v584 = vsel %vm165, %v520, %v552
    %v585 = vsel %vm167, %v584, %v515
    %587 = vrot.lane.b32.xlu0 %v585, 96
    %v588 = vpop.permute.xlu0 %587
    %v590 = vmul.f32 %v515, %v588
    %v592 = vsel %vm179, %v590, 0
    %594 = vmatpush.msra.mxu0 0.0
    %595 = vmatpush.msra.mxu0 0.0
    %596 = vmatpush.msra.mxu0 0.0
    %597 = vmatpush.msra.mxu0 0.0
    %598 = vmatpush.msra.mxu0 0.0
    %599 = vmatpush.msra.mxu0 0.0
    %600 = vmatpush.msra.mxu0 0.0
    %601 = vmatpush.msra.mxu0 0.0
    %602 = vmatpush.msra.mxu0 0.0
    %603 = vmatpush.msra.mxu0 0.0
    %604 = vmatpush.msra.mxu0 0.0
    %605 = vmatpush.msra.mxu0 0.0
    %606 = vmatpush.msra.mxu0 %v172
    %607 = vmatpush.msra.mxu0 %v171
    %608 = vmatpush.msra.mxu0 %v170
    %609 = vmatpush.msra.mxu0 %v169
    %610 = vmatmul.f32.gmra.mxu0 %v592
    %v611 = vpop.f32.mrf.mxu0
    %v612 = vadd.f32 0.0, %v611
    %613 = vdwg.mxu0
    %v614 = vmax.f32 %v550, %v582
    %v615 = vmax.f32 %v614, %v612
    %v616 = vsub.f32 %v550, %v615
    %v617 = vmul.f32 %v616, 1.442695
    %v618 = vpow.pop %v617
    %v619 = vsub.f32 %v582, %v615
    %v620 = vmul.f32 %v619, 1.442695
    %v621 = vpow.pop %v620
    %v622 = vsub.f32 %v612, %v615
    %v623 = vmul.f32 %v622, 1.442695
    %v624 = vpow.pop %v623
    %v625 = vadd.f32 %v618, %v621
    %v626 = vadd.f32 %v625, %v624
    %v627 = vrcp.pop %v626
    %628 = vrot.lane.b32.xlu0 %v523, 64
    %v629 = vpop.permute.xlu0 %628
    %v631 = vmul.f32 %v618, %v629
    %632 = vrot.lane.b32.xlu0 %v555, 64
    %v633 = vpop.permute.xlu0 %632
    %v635 = vmul.f32 %v621, %v633
    %v636 = vadd.f32 %v631, %v635
    %637 = vrot.lane.b32.xlu0 %v585, 64
    %v638 = vpop.permute.xlu0 %637
    %v640 = vmul.f32 %v624, %v638
    %v641 = vadd.f32 %v636, %v640
    %v642 = vmul.f32 %v641, %v627
    %v643 = vld [vmem:[#allocation5 + $0x108] sm:$0xff]
    %v644 = vld [vmem:[#allocation5 + $0x110] sm:$0xff]
    %v645 = vld [vmem:[#allocation5 + $0x118] sm:$0xff]
    %v646 = vld [vmem:[#allocation5 + $0x120] sm:$0xff]
    %v647 = vld [vmem:[#allocation7 + $0xb] sm:$0x1]
    %v648 = vperm.slane %v647, 0
    %v650 = vsel %vm179, %v642, 0
    %652 = vmatpush.msra.mxu0 0.0
    %653 = vmatpush.msra.mxu0 0.0
    %654 = vmatpush.msra.mxu0 0.0
    %655 = vmatpush.msra.mxu0 0.0
    %656 = vmatpush.msra.mxu0 0.0
    %657 = vmatpush.msra.mxu0 0.0
    %658 = vmatpush.msra.mxu0 0.0
    %659 = vmatpush.msra.mxu0 0.0
    %660 = vmatpush.msra.mxu0 0.0
    %661 = vmatpush.msra.mxu0 0.0
    %662 = vmatpush.msra.mxu0 0.0
    %663 = vmatpush.msra.mxu0 0.0
    %664 = vmatpush.msra.mxu0 %v646
    %665 = vmatpush.msra.mxu0 %v645
    %666 = vmatpush.msra.mxu0 %v644
    %667 = vmatpush.msra.mxu0 %v643
    %668 = vmatmul.f32.gmra.mxu0 %v650
    %v669 = vpop.f32.mrf.mxu0
    %v670 = vadd.f32 %v648, %v669
    %671 = vdwg.mxu0
    %v672 = vadd.f32 %v487, %v670
    %v673 = vld [vmem:[#allocation7 + $0xc] sm:$0x1]
    %v674 = vld [vmem:[#allocation7 + $0xd] sm:$0x1]
    %v675 = vsel %vm361, %v672, 0.0
    %676 = vadd.xlane.f32.xlu0 %v675
    %v677 = vpop.xlane.xlu0 %676
    %v678 = vmul.f32 %v677, %v371
    %v679 = vsub.f32 %v672, %v678
    %v680 = vmul.f32 %v679, %v679
    %v681 = vsel %vm361, %v680, 0.0
    %682 = vadd.xlane.f32.xlu0 %v681
    %v683 = vpop.xlane.xlu0 %682
    %v684 = vmul.f32 %v683, %v371
    %v685 = vadd.f32 %v684, 1e-05
    %v686 = vrsqrt.pop %v685
    %v687 = vmul.f32 %v686, %v685
    %v688 = vmul.f32 %v687, %v686
    %v689 = vmul.f32 0.5, %v688
    %v690 = vsub.f32 1.5, %v689
    %v691 = vmul.f32 %v686, %v690
    %vm692 = vweird.f32 %v685
    %vm693 = vweird.f32 %v686
    %vm694 = vmor %vm692, %vm693
    %v695 = vsel %vm694, %v686, %v691
    %v696 = vmul.f32 %v679, %v695
    %v697 = vperm.slane %v673, 0
    %v698 = vmul.f32 %v696, %v697
    %v699 = vperm.slane %v674, 0
    %v700 = vadd.f32 %v698, %v699
    %v701 = vld [vmem:[#allocation5 + $0x128] sm:$0xff]
    %v702 = vld [vmem:[#allocation5 + $0x130] sm:$0xff]
    %v703 = vld [vmem:[#allocation5 + $0x138] sm:$0xff]
    %v704 = vld [vmem:[#allocation5 + $0x140] sm:$0xff]
    %v705 = vld [vmem:[#allocation7 + $0xe] sm:$0x1]
    %v706 = vperm.slane %v705, 0
    %v708 = vsel %vm179, %v700, 0
    %710 = vmatpush.msra.mxu0 0.0
    %711 = vmatpush.msra.mxu0 0.0
    %712 = vmatpush.msra.mxu0 0.0
    %713 = vmatpush.msra.mxu0 0.0
    %714 = vmatpush.msra.mxu0 0.0
    %715 = vmatpush.msra.mxu0 0.0
    %716 = vmatpush.msra.mxu0 0.0
    %717 = vmatpush.msra.mxu0 0.0
    %718 = vmatpush.msra.mxu0 0.0
    %719 = vmatpush.msra.mxu0 0.0
    %720 = vmatpush.msra.mxu0 0.0
    %721 = vmatpush.msra.mxu0 0.0
    %722 = vmatpush.msra.mxu0 %v704
    %723 = vmatpush.msra.mxu0 %v703
    %724 = vmatpush.msra.mxu0 %v702
    %725 = vmatpush.msra.mxu0 %v701
    %726 = vmatmul.f32.gmra.mxu0 %v708
    %v727 = vpop.f32.mrf.mxu0
    %v728 = vadd.f32 %v706, %v727
    %729 = vdwg.mxu0
    %v730 = vmax.f32 %v728, 0.0
    %v731 = vld [vmem:[#allocation5 + $0x148] sm:$0xff]
    %v732 = vld [vmem:[#allocation5 + $0x150] sm:$0xff]
    %v733 = vld [vmem:[#allocation5 + $0x158] sm:$0xff]
    %v734 = vld [vmem:[#allocation5 + $0x160] sm:$0xff]
    %v735 = vld [vmem:[#allocation5 + $0x168] sm:$0xff]
    %v736 = vld [vmem:[#allocation5 + $0x170] sm:$0xff]
    %v737 = vld [vmem:[#allocation5 + $0x178] sm:$0xff]
    %v738 = vld [vmem:[#allocation5 + $0x180] sm:$0xff]
    %v739 = vld [vmem:[#allocation7 + $0xf] sm:$0x1]
    %v740 = vperm.slane %v739, 0
    %v742 = vsel %vm435, %v730, 0
    %744 = vmatpush.msra.mxu0 0.0
    %745 = vmatpush.msra.mxu0 0.0
    %746 = vmatpush.msra.mxu0 0.0
    %747 = vmatpush.msra.mxu0 0.0
    %748 = vmatpush.msra.mxu0 0.0
    %749 = vmatpush.msra.mxu0 0.0
    %750 = vmatpush.msra.mxu0 0.0
    %751 = vmatpush.msra.mxu0 0.0
    %752 = vmatpush.msra.mxu0 %v738
    %753 = vmatpush.msra.mxu0 %v737
    %754 = vmatpush.msra.mxu0 %v736
    %755 = vmatpush.msra.mxu0 %v735
    %756 = vmatpush.msra.mxu0 %v734
    %757 = vmatpush.msra.mxu0 %v733
    %758 = vmatpush.msra.mxu0 %v732
    %759 = vmatpush.msra.mxu0 %v731
    %760 = vmatmul.f32.gmra.mxu0 %v742
    %v761 = vpop.f32.mrf.mxu0
    %v762 = vadd.f32 %v740, %v761
    %763 = vdwg.mxu0
    %v764 = vadd.f32 %v700, %v762
    %v765 = vld [vmem:[#allocation7 + $0x10] sm:$0x1]
    %v766 = vld [vmem:[#allocation7 + $0x11] sm:$0x1]
    %v767 = vsel %vm361, %v764, 0.0
    %768 = vadd.xlane.f32.xlu0 %v767
    %v769 = vpop.xlane.xlu0 %768
    %v770 = vmul.f32 %v769, %v371
    %v771 = vsub.f32 %v764, %v770
    %v772 = vmul.f32 %v771, %v771
    %v773 = vsel %vm361, %v772, 0.0
    %774 = vadd.xlane.f32.xlu0 %v773
    %v775 = vpop.xlane.xlu0 %774
    %v776 = vmul.f32 %v775, %v371
    %v777 = vadd.f32 %v776, 1e-05
    %v778 = vrsqrt.pop %v777
    %v779 = vmul.f32 %v778, %v777
    %v780 = vmul.f32 %v779, %v778
    %v781 = vmul.f32 0.5, %v780
    %v782 = vsub.f32 1.5, %v781
    %v783 = vmul.f32 %v778, %v782
    %vm784 = vweird.f32 %v777
    %vm785 = vweird.f32 %v778
    %vm786 = vmor %vm784, %vm785
    %v787 = vsel %vm786, %v778, %v783
    %v788 = vmul.f32 %v771, %v787
    %v789 = vperm.slane %v765, 0
    %v790 = vmul.f32 %v788, %v789
    %v791 = vperm.slane %v766, 0
    %v792 = vadd.f32 %v790, %v791
    %v794 = vrot.slane %v792, 2
    %v796 = vadd.f32 %v792, %v794
    %v797 = vrot.slane %v792, 4
    %v799 = vadd.f32 %v796, %v797
    %v800 = vmul.f32 %v799, 0.33333334
    %v801 = vld [vmem:[#allocation5 + $0x188] sm:$0xff]
    %v802 = vld [vmem:[#allocation5 + $0x190] sm:$0xff]
    %v803 = vld [vmem:[#allocation5 + $0x198] sm:$0xff]
    %v804 = vld [vmem:[#allocation5 + $0x1a0] sm:$0xff]
    %v805 = vld [vmem:[#allocation7 + $0x12] sm:$0x1]
    %v806 = vperm.slane %v805, 0
    %v808 = vsel %vm179, %v800, 0
    %810 = vmatpush.msra.mxu0 0.0
    %811 = vmatpush.msra.mxu0 0.0
    %812 = vmatpush.msra.mxu0 0.0
    %813 = vmatpush.msra.mxu0 0.0
    %814 = vmatpush.msra.mxu0 0.0
    %815 = vmatpush.msra.mxu0 0.0
    %816 = vmatpush.msra.mxu0 0.0
    %817 = vmatpush.msra.mxu0 0.0
    %818 = vmatpush.msra.mxu0 0.0
    %819 = vmatpush.msra.mxu0 0.0
    %820 = vmatpush.msra.mxu0 0.0
    %821 = vmatpush.msra.mxu0 0.0
    %822 = vmatpush.msra.mxu0 %v804
    %823 = vmatpush.msra.mxu0 %v803
    %824 = vmatpush.msra.mxu0 %v802
    %825 = vmatpush.msra.mxu0 %v801
    %826 = vmatmul.f32.gmra.mxu0 %v808
    %v827 = vpop.f32.mrf.mxu0
    %v828 = vadd.f32 %v806, %v827
    %829 = vdwg.mxu0
    %v830 = vsel %vm165, %v828, -inf
    %831 = vmax.xlane.f32.xlu0 %v830
    %v832 = vpop.xlane.xlu0 %831
    %v833 = vsub.f32 %v828, %v832
    %v834 = vmul.f32 %v833, 1.442695
    %v835 = vpow.pop %v834
    %v836 = vsel %vm165, %v835, 0.0
    %837 = vadd.xlane.f32.xlu0 %v836
    %v838 = vpop.xlane.xlu0 %837
    %v839 = vrcp.pop %v838
    %v840 = vmul.f32 %v838, %v839
    %v841 = vsub.f32 1.0, %v840
    %v842 = vmul.f32 %v839, %v841
    %v843 = vadd.f32 %v839, %v842
    %vm844 = vweird.f32 %v838
    %vm845 = vweird.f32 %v839
    %vm846 = vmor %vm844, %vm845
    %v847 = vsel %vm846, %v839, %v843
    %v848 = vand.u32 2147483647, %v838
    %vm849 = vcmp.eq.f32.partialorder %v848, 8.507059e+37
    %v850 = vand.u32 %v838, 2147483648
    %v851 = vor.u32 1.1754944e-38, %v850
    %v852 = vsel %vm849, %v851, %v847
    %v853 = vmul.f32 %v835, %v852
    %854 = vst [vmem:[#allocation8] sm:$0x3] %v853
    // Predicated region
    $region26: #{tpu_custom_call.1} parent=1 // pred_check
      _
    $region27: #{tpu_custom_call.1} parent=1 // pred_check_branch
      %856 = sbr.rel (0) target = $region29
    $region28: #{tpu_custom_call.1} parent=1 // pred_region
      %858 = vsyncadd [#allocation4], 0
      %s860 = sshll.u32 [#allocation8], 4
      %s861 = int_to_ptr.vmem [resolvable:$true] %s860
      %s862 = sshll.u32 %s3, 4
      %s863 = int_to_ptr.hbm [resolvable:$true] %s862
      %865 = dma.vmem_to_hbm [thread:$0]  %s861, 32, %s863, [#allocation4]
    $region29: #{tpu_custom_call.1} parent=1 // pred_fallthru
      _
    // Predicated region
    $region30: #{tpu_custom_call.1} parent=1 // pred_check
      _
    $region31: #{tpu_custom_call.1} parent=1 // pred_check_branch
      %867 = sbr.rel (0) target = $region33
    $region32: #{tpu_custom_call.1} parent=1 // pred_region
      %869 = dma.done [#allocation4], 32
    $region33: #{tpu_custom_call.1} parent=1 // pred_fallthru
      _
    %870 = vsyncpa [#allocation3], 1
    %871 = vsyncpa [#allocation6], 1
    %872 = vsyncpa [#allocation4], 1

</llo_original>
